<compile_context>
chip_gen: v7x
topology: tpu7x:2x2x1
jax: 0.10.0
libtpu: 0.0.40
codegen_flags: <defaults>
</compile_context>

<pallas_src>
import numpy as np
import jax
import jax.numpy as jnp
from jax.experimental import pallas as pl
from jax.experimental.pallas import tpu as pltpu

# ----- config (small, consistent with GhostConv defaults k=1, s=1) -----
B = 2
C1 = 4              # input channels
C2 = 16             # output channels
C_ = C2 // 2        # hidden ("ghost") channels = 8
H = W = 16          # spatial resolution
KD = 5              # depthwise kernel size of cv2
PAD = KD // 2       # autopad(5) = 2
BN_EPS = 1e-5       # torch nn.BatchNorm2d default eps

LANES = W * C_      # 128 -> packed row width (lane dense)
assert LANES == 128


# ------------------------------------------------------------------ kernel
def _ghostconv_kernel(x_ref, w1_ref, bias_ref, wt_ref, sm_ref, o_ref):
    """Whole batch in one invocation; both conv stages stay fused in VMEM/vregs.

    x_ref  : (B*H, W*C1)      packed NHWC rows (lane = pixel*C1 + channel)
    w1_ref : (W*C1, W*C_)     kron(I_W, w1 * bn1_scale)  (BN scale pre-folded)
    bias_ref: (2, W*C_)       row 0 = folded bn1 bias, row 1 = folded bn2 bias
    wt_ref : (25, W*C_)       depthwise taps * bn2_scale * horizontal-pad mask
    sm_ref : (5, B*H, B*H)    banded per-image row-shift matrices (vertical taps + zero pad)
    o_ref  : (2, B*H, W*C_)   slot 0 = y, slot 1 = cv2(y)
    """
    # ---- cv1: single batched MXU matmul + bias + SiLU (BN scale folded into weights) ----
    y = jnp.dot(x_ref[...], w1_ref[...], preferred_element_type=jnp.float32)  # (BH, 128)
    y = y + bias_ref[0]
    y = y / (1.0 + jnp.exp(-y))                       # SiLU: exp -> EUP, one exact divide
    o_ref[0] = y.astype(o_ref.dtype)

    # ---- cv2: depthwise 5x5, pad 2 ----
    # Horizontal taps: XLU lane rolls by multiples of C_ (wrap garbage zeroed by the mask
    # folded into wt).  Rolls computed once and reused across the 5 vertical taps.
    zs = []
    for kj in range(KD):
        shift = ((PAD - kj) * C_) % LANES             # z_kj[lane] = y[lane + (kj-PAD)*C_]
        zs.append(y if shift == 0 else pltpu.roll(y, shift, axis=1))

    wt = wt_ref[...]                                  # (25, 128)
    acc = jnp.zeros_like(y)
    for ki in range(KD):
        # per-lane weighted combination of the 5 horizontally shifted copies (VPU FMAs)
        inner = zs[0] * wt[ki * KD + 0]
        for kj in range(1, KD):
            inner = inner + zs[kj] * wt[ki * KD + kj]
        # vertical shift + per-image zero padding via a small banded matmul (MXU)
        acc = acc + jnp.dot(sm_ref[ki], inner, preferred_element_type=jnp.float32)

    y2 = acc + bias_ref[1]
    y2 = y2 / (1.0 + jnp.exp(-y2))                    # SiLU
    o_ref[1] = y2.astype(o_ref.dtype)


# ------------------------------------------------------------------ param prep (trace-time)
def prepare_packed_params(p, batch):
    # folded BN (inference running stats)
    s1 = p["bn1_g"] / jnp.sqrt(p["bn1_var"] + BN_EPS)
    b1 = p["bn1_b"] - p["bn1_mean"] * s1
    s2 = p["bn2_g"] / jnp.sqrt(p["bn2_var"] + BN_EPS)
    b2 = p["bn2_b"] - p["bn2_mean"] * s2

    # cv1 weight (C_, C1, 1, 1) -> (C1, C_), BN scale folded into output-channel columns,
    # then block-diagonal packed (W*C1, W*C_).
    w1 = p["cv1_w"].reshape(C_, C1).T * s1[None, :]
    w1p = jnp.kron(jnp.eye(W, dtype=jnp.float32), w1)                 # (64, 128)

    # biases packed per lane (lane = pixel*C_ + channel); one (2, 128) operand.
    biasp = jnp.stack([jnp.tile(b1, W), jnp.tile(b2, W)])             # (2, 128)

    # cv2 depthwise taps (C_, 1, 5, 5): fold BN scale, pack per lane, fold the horizontal
    # zero-pad validity mask (depends only on pixel column p and kj).
    w2 = p["cv2_w"][:, 0] * s2[:, None, None]                         # (C_, 5, 5)
    wrows = jnp.transpose(w2, (1, 2, 0)).reshape(KD * KD, C_)         # row t=ki*5+kj
    wtile = jnp.tile(wrows, (1, W))                                   # (25, 128)
    src = jnp.arange(W)[None, :] + (jnp.arange(KD) - PAD)[:, None]    # (5, W) src pixel per (kj, p)
    hmask = ((src >= 0) & (src < W)).astype(jnp.float32)              # (5, W)
    hmask = jnp.repeat(hmask, C_, axis=1)                             # (5, 128)
    hmask = jnp.tile(hmask, (KD, 1))                                  # (25, 128), row t -> kj = t % 5
    wtp = wtile * hmask

    # vertical shift matrices: S[ki, r_out, r_in] = 1 iff r_in == r_out + (ki-PAD) and both
    # rows belong to the same image (exact per-image vertical zero padding).
    bh = batch * H
    rows = np.arange(bh)
    smats = np.zeros((KD, bh, bh), np.float32)
    for ki in range(KD):
        di = ki - PAD
        valid = (rows + di >= 0) & (rows + di < bh)
        r_out = rows[valid]
        r_in = r_out + di
        same = (r_out // H) == (r_in // H)
        smats[ki, r_out[same], r_in[same]] = 1.0
    smp = jnp.asarray(smats)                                          # (5, BH, BH)

    return w1p, biasp, wtp, smp


def init_params(key):
    ks = jax.random.split(key, 10)
    return {
        "cv1_w": 0.3 * jax.random.normal(ks[0], (C_, C1, 1, 1), jnp.float32),
        "bn1_g": 1.0 + 0.1 * jax.random.normal(ks[1], (C_,), jnp.float32),
        "bn1_b": 0.1 * jax.random.normal(ks[2], (C_,), jnp.float32),
        "bn1_mean": 0.1 * jax.random.normal(ks[3], (C_,), jnp.float32),
        "bn1_var": 0.5 + jax.random.uniform(ks[4], (C_,), jnp.float32),
        "cv2_w": 0.3 * jax.random.normal(ks[5], (C_, 1, KD, KD), jnp.float32),
        "bn2_g": 1.0 + 0.1 * jax.random.normal(ks[6], (C_,), jnp.float32),
        "bn2_b": 0.1 * jax.random.normal(ks[7], (C_,), jnp.float32),
        "bn2_mean": 0.1 * jax.random.normal(ks[8], (C_,), jnp.float32),
        "bn2_var": 0.5 + jax.random.uniform(ks[9], (C_,), jnp.float32),
    }


# ------------------------------------------------------------------ forward (wrapper)
def ghostconv_forward(x, p):
    b, c1, h, w = x.shape
    assert (c1, h, w) == (C1, H, W)
    bh = b * H

    # NCHW -> packed channels-last rows (B*H, W*C1).  If this op lived inside a packed
    # network these transposes would be dropped and the layout kept end-to-end.
    xp = jnp.transpose(x, (0, 2, 3, 1)).reshape(bh, W * C1)
    w1p, biasp, wtp, smp = prepare_packed_params(p, b)

    out = pl.pallas_call(
        _ghostconv_kernel,
        out_shape=jax.ShapeDtypeStruct((2, bh, LANES), jnp.float32),
        grid=(1,),                                       # single step: whole batch at once
        in_specs=[
            pl.BlockSpec((bh, W * C1), lambda i: (0, 0)),        # packed input
            pl.BlockSpec((W * C1, LANES), lambda i: (0, 0)),     # kron(I_W, w1*s1)
            pl.BlockSpec((2, LANES), lambda i: (0, 0)),          # merged biases
            pl.BlockSpec((KD * KD, LANES), lambda i: (0, 0)),    # depthwise taps (masked, scaled)
            pl.BlockSpec((KD, bh, bh), lambda i: (0, 0, 0)),     # vertical shift matrices
        ],
        out_specs=pl.BlockSpec((2, bh, LANES), lambda i: (0, 0, 0)),
        compiler_params=pltpu.CompilerParams(dimension_semantics=("arbitrary",)),
    )(xp, w1p, biasp, wtp, smp)

    # (2, B*H, W*C_) -> (B, 2, C_, H, W) -> (B, C2, H, W)  == torch.cat((y, cv2(y)), dim=1)
    out = out.reshape(2, b, H, W, C_).transpose(1, 0, 4, 2, 3).reshape(b, C2, H, W)
    return out


# ------------------------------------------------------------------ pure-JAX reference
def reference_forward(x, p):
    def bn_silu(v, g, be, m, var):
        s = g / jnp.sqrt(var + BN_EPS)
        v = v * s[None, :, None, None] + (be - m * s)[None, :, None, None]
        return v / (1.0 + jnp.exp(-v))

    y = jax.lax.conv_general_dilated(
        x, p["cv1_w"], window_strides=(1, 1), padding="VALID",
        dimension_numbers=("NCHW", "OIHW", "NCHW"))
    y = bn_silu(y, p["bn1_g"], p["bn1_b"], p["bn1_mean"], p["bn1_var"])

    y2 = jax.lax.conv_general_dilated(
        y, p["cv2_w"], window_strides=(1, 1), padding=((PAD, PAD), (PAD, PAD)),
        dimension_numbers=("NCHW", "OIHW", "NCHW"), feature_group_count=C_)
    y2 = bn_silu(y2, p["bn2_g"], p["bn2_b"], p["bn2_mean"], p["bn2_var"])
    return jnp.concatenate([y, y2], axis=1)


if __name__ == "__main__":
    key = jax.random.PRNGKey(0)
    pk, xk = jax.random.split(key)
    params = init_params(pk)
    x = jax.random.normal(xk, (B, C1, H, W), jnp.float32)              # NCHW, like the module

    fwd = jax.jit(ghostconv_forward)
    out = jax.block_until_ready(fwd(x, params))

    ref = reference_forward(x, params)
    assert out.shape == (B, C2, H, W)
    assert np.allclose(np.asarray(out), np.asarray(ref), atol=2e-4, rtol=2e-4)
    print("KERNEL_OK")
</pallas_src>

<mosaic_0001>
module attributes {stable_mosaic.version = 11 : i64} {
  func.func @_ghostconv_kernel(%arg0: i32, %arg1: memref<32x64xf32, #tpu.memory_space<vmem>>, %arg2: memref<64x128xf32, #tpu.memory_space<vmem>>, %arg3: memref<2x128xf32, #tpu.memory_space<vmem>>, %arg4: memref<25x128xf32, #tpu.memory_space<vmem>>, %arg5: memref<5x32x32xf32, #tpu.memory_space<vmem>>, %arg6: memref<2x32x128xf32, #tpu.memory_space<vmem>>) attributes {dimension_semantics = [#tpu.dimension_semantics<arbitrary>], iteration_bounds = array<i64: 1>, scalar_prefetch = 0 : i64, scratch_operands = 0 : i64, tpu.core_type = #tpu.core_type<tc>, window_params = [{pipeline_mode = #tpu.pipeline_mode<synchronous>, transform_indices = @transform_0, window_bounds = array<i64: 32, 64>}, {pipeline_mode = #tpu.pipeline_mode<synchronous>, transform_indices = @transform_1, window_bounds = array<i64: 64, 128>}, {pipeline_mode = #tpu.pipeline_mode<synchronous>, transform_indices = @transform_2, window_bounds = array<i64: 2, 128>}, {pipeline_mode = #tpu.pipeline_mode<synchronous>, transform_indices = @transform_3, window_bounds = array<i64: 25, 128>}, {pipeline_mode = #tpu.pipeline_mode<synchronous>, transform_indices = @transform_4, window_bounds = array<i64: 5, 32, 32>}, {pipeline_mode = #tpu.pipeline_mode<synchronous>, transform_indices = @transform_5, window_bounds = array<i64: 2, 32, 128>}]} {
    %c0 = arith.constant 0 : index
    %c0_0 = arith.constant 0 : index
    %0 = vector.load %arg1[%c0, %c0_0] : memref<32x64xf32, #tpu.memory_space<vmem>>, vector<32x64xf32>
    %c0_1 = arith.constant 0 : index
    %c0_2 = arith.constant 0 : index
    %1 = vector.load %arg2[%c0_1, %c0_2] : memref<64x128xf32, #tpu.memory_space<vmem>>, vector<64x128xf32>
    %cst = arith.constant dense<0.000000e+00> : vector<32x128xf32>
    %2 = tpu.matmul %0, %1, %cst {dimension_numbers = #tpu.dot_dimension_numbers<[1], [0], [0], [1], [0, 0, 1, 1], [], []>} : vector<32x64xf32>, vector<64x128xf32>, vector<32x128xf32> -> vector<32x128xf32>
    %c0_3 = arith.constant 0 : index
    %c0_4 = arith.constant 0 : index
    %3 = vector.load %arg3[%c0_3, %c0_4] : memref<2x128xf32, #tpu.memory_space<vmem>>, vector<1x128xf32>
    %4 = vector.shape_cast %3 : vector<1x128xf32> to vector<128xf32>
    %5 = vector.shape_cast %4 : vector<128xf32> to vector<1x128xf32>
    %6 = vector.broadcast %5 : vector<1x128xf32> to vector<32x128xf32>
    %7 = arith.addf %2, %6 : vector<32x128xf32>
    %cst_5 = arith.constant 0.000000e+00 : f32
    %8 = vector.broadcast %cst_5 : f32 to vector<32x128xf32>
    %9 = arith.subf %8, %7 : vector<32x128xf32>
    %10 = math.exp %9 : vector<32x128xf32>
    %cst_6 = arith.constant 1.000000e+00 : f32
    %11 = vector.broadcast %cst_6 : f32 to vector<32x128xf32>
    %12 = arith.addf %11, %10 : vector<32x128xf32>
    %13 = arith.divf %7, %12 : vector<32x128xf32>
    %c0_7 = arith.constant 0 : index
    %c0_8 = arith.constant 0 : index
    %c0_9 = arith.constant 0 : index
    %14 = vector.load %arg6[%c0_7, %c0_8, %c0_9] : memref<2x32x128xf32, #tpu.memory_space<vmem>>, vector<1x32x128xf32>
    %15 = vector.shape_cast %14 : vector<1x32x128xf32> to vector<32x128xf32>
    %16 = vector.shape_cast %13 : vector<32x128xf32> to vector<1x32x128xf32>
    tpu.vector_store %arg6[%c0_7, %c0_8, %c0_9], %16 {strides = array<i32>} : memref<2x32x128xf32, #tpu.memory_space<vmem>>, vector<1x32x128xf32>,
    %c16_i32 = arith.constant 16 : i32
    %17 = tpu.dynamic_rotate %13 by %c16_i32 dim 1 : vector<32x128xf32>, i32 -> vector<32x128xf32>
    %c8_i32 = arith.constant 8 : i32
    %18 = tpu.dynamic_rotate %13 by %c8_i32 dim 1 : vector<32x128xf32>, i32 -> vector<32x128xf32>
    %c120_i32 = arith.constant 120 : i32
    %19 = tpu.dynamic_rotate %13 by %c120_i32 dim 1 : vector<32x128xf32>, i32 -> vector<32x128xf32>
    %c112_i32 = arith.constant 112 : i32
    %20 = tpu.dynamic_rotate %13 by %c112_i32 dim 1 : vector<32x128xf32>, i32 -> vector<32x128xf32>
    %c0_10 = arith.constant 0 : index
    %c0_11 = arith.constant 0 : index
    %21 = vector.load %arg4[%c0_10, %c0_11] : memref<25x128xf32, #tpu.memory_space<vmem>>, vector<25x128xf32>
    %cst_12 = arith.constant 0.000000e+00 : f32
    %22 = vector.broadcast %cst_12 : f32 to vector<32x128xf32>
    %23 = vector.extract_strided_slice %21 {offsets = [0, 0], sizes = [1, 128], strides = [1, 1]} : vector<25x128xf32> to vector<1x128xf32>
    %24 = vector.shape_cast %23 : vector<1x128xf32> to vector<128xf32>
    %25 = vector.shape_cast %24 : vector<128xf32> to vector<1x128xf32>
    %26 = vector.broadcast %25 : vector<1x128xf32> to vector<32x128xf32>
    %27 = arith.mulf %17, %26 : vector<32x128xf32>
    %28 = vector.extract_strided_slice %21 {offsets = [1, 0], sizes = [1, 128], strides = [1, 1]} : vector<25x128xf32> to vector<1x128xf32>
    %29 = vector.shape_cast %28 : vector<1x128xf32> to vector<128xf32>
    %30 = vector.shape_cast %29 : vector<128xf32> to vector<1x128xf32>
    %31 = vector.broadcast %30 : vector<1x128xf32> to vector<32x128xf32>
    %32 = arith.mulf %18, %31 : vector<32x128xf32>
    %33 = arith.addf %27, %32 : vector<32x128xf32>
    %34 = vector.extract_strided_slice %21 {offsets = [2, 0], sizes = [1, 128], strides = [1, 1]} : vector<25x128xf32> to vector<1x128xf32>
    %35 = vector.shape_cast %34 : vector<1x128xf32> to vector<128xf32>
    %36 = vector.shape_cast %35 : vector<128xf32> to vector<1x128xf32>
    %37 = vector.broadcast %36 : vector<1x128xf32> to vector<32x128xf32>
    %38 = arith.mulf %13, %37 : vector<32x128xf32>
    %39 = arith.addf %33, %38 : vector<32x128xf32>
    %40 = vector.extract_strided_slice %21 {offsets = [3, 0], sizes = [1, 128], strides = [1, 1]} : vector<25x128xf32> to vector<1x128xf32>
    %41 = vector.shape_cast %40 : vector<1x128xf32> to vector<128xf32>
    %42 = vector.shape_cast %41 : vector<128xf32> to vector<1x128xf32>
    %43 = vector.broadcast %42 : vector<1x128xf32> to vector<32x128xf32>
    %44 = arith.mulf %19, %43 : vector<32x128xf32>
    %45 = arith.addf %39, %44 : vector<32x128xf32>
    %46 = vector.extract_strided_slice %21 {offsets = [4, 0], sizes = [1, 128], strides = [1, 1]} : vector<25x128xf32> to vector<1x128xf32>
    %47 = vector.shape_cast %46 : vector<1x128xf32> to vector<128xf32>
    %48 = vector.shape_cast %47 : vector<128xf32> to vector<1x128xf32>
    %49 = vector.broadcast %48 : vector<1x128xf32> to vector<32x128xf32>
    %50 = arith.mulf %20, %49 : vector<32x128xf32>
    %51 = arith.addf %45, %50 : vector<32x128xf32>
    %c0_13 = arith.constant 0 : index
    %c0_14 = arith.constant 0 : index
    %c0_15 = arith.constant 0 : index
    %52 = vector.load %arg5[%c0_13, %c0_14, %c0_15] : memref<5x32x32xf32, #tpu.memory_space<vmem>>, vector<1x32x32xf32>
    %53 = vector.shape_cast %52 : vector<1x32x32xf32> to vector<32x32xf32>
    %cst_16 = arith.constant dense<0.000000e+00> : vector<32x128xf32>
    %54 = tpu.matmul %53, %51, %cst_16 {dimension_numbers = #tpu.dot_dimension_numbers<[1], [0], [0], [1], [0, 0, 1, 1], [], []>} : vector<32x32xf32>, vector<32x128xf32>, vector<32x128xf32> -> vector<32x128xf32>
    %55 = arith.addf %22, %54 : vector<32x128xf32>
    %56 = vector.extract_strided_slice %21 {offsets = [5, 0], sizes = [1, 128], strides = [1, 1]} : vector<25x128xf32> to vector<1x128xf32>
    %57 = vector.shape_cast %56 : vector<1x128xf32> to vector<128xf32>
    %58 = vector.shape_cast %57 : vector<128xf32> to vector<1x128xf32>
    %59 = vector.broadcast %58 : vector<1x128xf32> to vector<32x128xf32>
    %60 = arith.mulf %17, %59 : vector<32x128xf32>
    %61 = vector.extract_strided_slice %21 {offsets = [6, 0], sizes = [1, 128], strides = [1, 1]} : vector<25x128xf32> to vector<1x128xf32>
    %62 = vector.shape_cast %61 : vector<1x128xf32> to vector<128xf32>
    %63 = vector.shape_cast %62 : vector<128xf32> to vector<1x128xf32>
    %64 = vector.broadcast %63 : vector<1x128xf32> to vector<32x128xf32>
    %65 = arith.mulf %18, %64 : vector<32x128xf32>
    %66 = arith.addf %60, %65 : vector<32x128xf32>
    %67 = vector.extract_strided_slice %21 {offsets = [7, 0], sizes = [1, 128], strides = [1, 1]} : vector<25x128xf32> to vector<1x128xf32>
    %68 = vector.shape_cast %67 : vector<1x128xf32> to vector<128xf32>
    %69 = vector.shape_cast %68 : vector<128xf32> to vector<1x128xf32>
    %70 = vector.broadcast %69 : vector<1x128xf32> to vector<32x128xf32>
    %71 = arith.mulf %13, %70 : vector<32x128xf32>
    %72 = arith.addf %66, %71 : vector<32x128xf32>
    %73 = vector.extract_strided_slice %21 {offsets = [8, 0], sizes = [1, 128], strides = [1, 1]} : vector<25x128xf32> to vector<1x128xf32>
    %74 = vector.shape_cast %73 : vector<1x128xf32> to vector<128xf32>
    %75 = vector.shape_cast %74 : vector<128xf32> to vector<1x128xf32>
    %76 = vector.broadcast %75 : vector<1x128xf32> to vector<32x128xf32>
    %77 = arith.mulf %19, %76 : vector<32x128xf32>
    %78 = arith.addf %72, %77 : vector<32x128xf32>
    %79 = vector.extract_strided_slice %21 {offsets = [9, 0], sizes = [1, 128], strides = [1, 1]} : vector<25x128xf32> to vector<1x128xf32>
    %80 = vector.shape_cast %79 : vector<1x128xf32> to vector<128xf32>
    %81 = vector.shape_cast %80 : vector<128xf32> to vector<1x128xf32>
    %82 = vector.broadcast %81 : vector<1x128xf32> to vector<32x128xf32>
    %83 = arith.mulf %20, %82 : vector<32x128xf32>
    %84 = arith.addf %78, %83 : vector<32x128xf32>
    %c1 = arith.constant 1 : index
    %c0_17 = arith.constant 0 : index
    %c0_18 = arith.constant 0 : index
    %85 = vector.load %arg5[%c1, %c0_17, %c0_18] : memref<5x32x32xf32, #tpu.memory_space<vmem>>, vector<1x32x32xf32>
    %86 = vector.shape_cast %85 : vector<1x32x32xf32> to vector<32x32xf32>
    %cst_19 = arith.constant dense<0.000000e+00> : vector<32x128xf32>
    %87 = tpu.matmul %86, %84, %cst_19 {dimension_numbers = #tpu.dot_dimension_numbers<[1], [0], [0], [1], [0, 0, 1, 1], [], []>} : vector<32x32xf32>, vector<32x128xf32>, vector<32x128xf32> -> vector<32x128xf32>
    %88 = arith.addf %55, %87 : vector<32x128xf32>
    %89 = vector.extract_strided_slice %21 {offsets = [10, 0], sizes = [1, 128], strides = [1, 1]} : vector<25x128xf32> to vector<1x128xf32>
    %90 = vector.shape_cast %89 : vector<1x128xf32> to vector<128xf32>
    %91 = vector.shape_cast %90 : vector<128xf32> to vector<1x128xf32>
    %92 = vector.broadcast %91 : vector<1x128xf32> to vector<32x128xf32>
    %93 = arith.mulf %17, %92 : vector<32x128xf32>
    %94 = vector.extract_strided_slice %21 {offsets = [11, 0], sizes = [1, 128], strides = [1, 1]} : vector<25x128xf32> to vector<1x128xf32>
    %95 = vector.shape_cast %94 : vector<1x128xf32> to vector<128xf32>
    %96 = vector.shape_cast %95 : vector<128xf32> to vector<1x128xf32>
    %97 = vector.broadcast %96 : vector<1x128xf32> to vector<32x128xf32>
    %98 = arith.mulf %18, %97 : vector<32x128xf32>
    %99 = arith.addf %93, %98 : vector<32x128xf32>
    %100 = vector.extract_strided_slice %21 {offsets = [12, 0], sizes = [1, 128], strides = [1, 1]} : vector<25x128xf32> to vector<1x128xf32>
    %101 = vector.shape_cast %100 : vector<1x128xf32> to vector<128xf32>
    %102 = vector.shape_cast %101 : vector<128xf32> to vector<1x128xf32>
    %103 = vector.broadcast %102 : vector<1x128xf32> to vector<32x128xf32>
    %104 = arith.mulf %13, %103 : vector<32x128xf32>
    %105 = arith.addf %99, %104 : vector<32x128xf32>
    %106 = vector.extract_strided_slice %21 {offsets = [13, 0], sizes = [1, 128], strides = [1, 1]} : vector<25x128xf32> to vector<1x128xf32>
    %107 = vector.shape_cast %106 : vector<1x128xf32> to vector<128xf32>
    %108 = vector.shape_cast %107 : vector<128xf32> to vector<1x128xf32>
    %109 = vector.broadcast %108 : vector<1x128xf32> to vector<32x128xf32>
    %110 = arith.mulf %19, %109 : vector<32x128xf32>
    %111 = arith.addf %105, %110 : vector<32x128xf32>
    %112 = vector.extract_strided_slice %21 {offsets = [14, 0], sizes = [1, 128], strides = [1, 1]} : vector<25x128xf32> to vector<1x128xf32>
    %113 = vector.shape_cast %112 : vector<1x128xf32> to vector<128xf32>
    %114 = vector.shape_cast %113 : vector<128xf32> to vector<1x128xf32>
    %115 = vector.broadcast %114 : vector<1x128xf32> to vector<32x128xf32>
    %116 = arith.mulf %20, %115 : vector<32x128xf32>
    %117 = arith.addf %111, %116 : vector<32x128xf32>
    %c2 = arith.constant 2 : index
    %c0_20 = arith.constant 0 : index
    %c0_21 = arith.constant 0 : index
    %118 = vector.load %arg5[%c2, %c0_20, %c0_21] : memref<5x32x32xf32, #tpu.memory_space<vmem>>, vector<1x32x32xf32>
    %119 = vector.shape_cast %118 : vector<1x32x32xf32> to vector<32x32xf32>
    %cst_22 = arith.constant dense<0.000000e+00> : vector<32x128xf32>
    %120 = tpu.matmul %119, %117, %cst_22 {dimension_numbers = #tpu.dot_dimension_numbers<[1], [0], [0], [1], [0, 0, 1, 1], [], []>} : vector<32x32xf32>, vector<32x128xf32>, vector<32x128xf32> -> vector<32x128xf32>
    %121 = arith.addf %88, %120 : vector<32x128xf32>
    %122 = vector.extract_strided_slice %21 {offsets = [15, 0], sizes = [1, 128], strides = [1, 1]} : vector<25x128xf32> to vector<1x128xf32>
    %123 = vector.shape_cast %122 : vector<1x128xf32> to vector<128xf32>
    %124 = vector.shape_cast %123 : vector<128xf32> to vector<1x128xf32>
    %125 = vector.broadcast %124 : vector<1x128xf32> to vector<32x128xf32>
    %126 = arith.mulf %17, %125 : vector<32x128xf32>
    %127 = vector.extract_strided_slice %21 {offsets = [16, 0], sizes = [1, 128], strides = [1, 1]} : vector<25x128xf32> to vector<1x128xf32>
    %128 = vector.shape_cast %127 : vector<1x128xf32> to vector<128xf32>
    %129 = vector.shape_cast %128 : vector<128xf32> to vector<1x128xf32>
    %130 = vector.broadcast %129 : vector<1x128xf32> to vector<32x128xf32>
    %131 = arith.mulf %18, %130 : vector<32x128xf32>
    %132 = arith.addf %126, %131 : vector<32x128xf32>
    %133 = vector.extract_strided_slice %21 {offsets = [17, 0], sizes = [1, 128], strides = [1, 1]} : vector<25x128xf32> to vector<1x128xf32>
    %134 = vector.shape_cast %133 : vector<1x128xf32> to vector<128xf32>
    %135 = vector.shape_cast %134 : vector<128xf32> to vector<1x128xf32>
    %136 = vector.broadcast %135 : vector<1x128xf32> to vector<32x128xf32>
    %137 = arith.mulf %13, %136 : vector<32x128xf32>
    %138 = arith.addf %132, %137 : vector<32x128xf32>
    %139 = vector.extract_strided_slice %21 {offsets = [18, 0], sizes = [1, 128], strides = [1, 1]} : vector<25x128xf32> to vector<1x128xf32>
    %140 = vector.shape_cast %139 : vector<1x128xf32> to vector<128xf32>
    %141 = vector.shape_cast %140 : vector<128xf32> to vector<1x128xf32>
    %142 = vector.broadcast %141 : vector<1x128xf32> to vector<32x128xf32>
    %143 = arith.mulf %19, %142 : vector<32x128xf32>
    %144 = arith.addf %138, %143 : vector<32x128xf32>
    %145 = vector.extract_strided_slice %21 {offsets = [19, 0], sizes = [1, 128], strides = [1, 1]} : vector<25x128xf32> to vector<1x128xf32>
    %146 = vector.shape_cast %145 : vector<1x128xf32> to vector<128xf32>
    %147 = vector.shape_cast %146 : vector<128xf32> to vector<1x128xf32>
    %148 = vector.broadcast %147 : vector<1x128xf32> to vector<32x128xf32>
    %149 = arith.mulf %20, %148 : vector<32x128xf32>
    %150 = arith.addf %144, %149 : vector<32x128xf32>
    %c3 = arith.constant 3 : index
    %c0_23 = arith.constant 0 : index
    %c0_24 = arith.constant 0 : index
    %151 = vector.load %arg5[%c3, %c0_23, %c0_24] : memref<5x32x32xf32, #tpu.memory_space<vmem>>, vector<1x32x32xf32>
    %152 = vector.shape_cast %151 : vector<1x32x32xf32> to vector<32x32xf32>
    %cst_25 = arith.constant dense<0.000000e+00> : vector<32x128xf32>
    %153 = tpu.matmul %152, %150, %cst_25 {dimension_numbers = #tpu.dot_dimension_numbers<[1], [0], [0], [1], [0, 0, 1, 1], [], []>} : vector<32x32xf32>, vector<32x128xf32>, vector<32x128xf32> -> vector<32x128xf32>
    %154 = arith.addf %121, %153 : vector<32x128xf32>
    %155 = vector.extract_strided_slice %21 {offsets = [20, 0], sizes = [1, 128], strides = [1, 1]} : vector<25x128xf32> to vector<1x128xf32>
    %156 = vector.shape_cast %155 : vector<1x128xf32> to vector<128xf32>
    %157 = vector.shape_cast %156 : vector<128xf32> to vector<1x128xf32>
    %158 = vector.broadcast %157 : vector<1x128xf32> to vector<32x128xf32>
    %159 = arith.mulf %17, %158 : vector<32x128xf32>
    %160 = vector.extract_strided_slice %21 {offsets = [21, 0], sizes = [1, 128], strides = [1, 1]} : vector<25x128xf32> to vector<1x128xf32>
    %161 = vector.shape_cast %160 : vector<1x128xf32> to vector<128xf32>
    %162 = vector.shape_cast %161 : vector<128xf32> to vector<1x128xf32>
    %163 = vector.broadcast %162 : vector<1x128xf32> to vector<32x128xf32>
    %164 = arith.mulf %18, %163 : vector<32x128xf32>
    %165 = arith.addf %159, %164 : vector<32x128xf32>
    %166 = vector.extract_strided_slice %21 {offsets = [22, 0], sizes = [1, 128], strides = [1, 1]} : vector<25x128xf32> to vector<1x128xf32>
    %167 = vector.shape_cast %166 : vector<1x128xf32> to vector<128xf32>
    %168 = vector.shape_cast %167 : vector<128xf32> to vector<1x128xf32>
    %169 = vector.broadcast %168 : vector<1x128xf32> to vector<32x128xf32>
    %170 = arith.mulf %13, %169 : vector<32x128xf32>
    %171 = arith.addf %165, %170 : vector<32x128xf32>
    %172 = vector.extract_strided_slice %21 {offsets = [23, 0], sizes = [1, 128], strides = [1, 1]} : vector<25x128xf32> to vector<1x128xf32>
    %173 = vector.shape_cast %172 : vector<1x128xf32> to vector<128xf32>
    %174 = vector.shape_cast %173 : vector<128xf32> to vector<1x128xf32>
    %175 = vector.broadcast %174 : vector<1x128xf32> to vector<32x128xf32>
    %176 = arith.mulf %19, %175 : vector<32x128xf32>
    %177 = arith.addf %171, %176 : vector<32x128xf32>
    %178 = vector.extract_strided_slice %21 {offsets = [24, 0], sizes = [1, 128], strides = [1, 1]} : vector<25x128xf32> to vector<1x128xf32>
    %179 = vector.shape_cast %178 : vector<1x128xf32> to vector<128xf32>
    %180 = vector.shape_cast %179 : vector<128xf32> to vector<1x128xf32>
    %181 = vector.broadcast %180 : vector<1x128xf32> to vector<32x128xf32>
    %182 = arith.mulf %20, %181 : vector<32x128xf32>
    %183 = arith.addf %177, %182 : vector<32x128xf32>
    %c4 = arith.constant 4 : index
    %c0_26 = arith.constant 0 : index
    %c0_27 = arith.constant 0 : index
    %184 = vector.load %arg5[%c4, %c0_26, %c0_27] : memref<5x32x32xf32, #tpu.memory_space<vmem>>, vector<1x32x32xf32>
    %185 = vector.shape_cast %184 : vector<1x32x32xf32> to vector<32x32xf32>
    %cst_28 = arith.constant dense<0.000000e+00> : vector<32x128xf32>
    %186 = tpu.matmul %185, %183, %cst_28 {dimension_numbers = #tpu.dot_dimension_numbers<[1], [0], [0], [1], [0, 0, 1, 1], [], []>} : vector<32x32xf32>, vector<32x128xf32>, vector<32x128xf32> -> vector<32x128xf32>
    %187 = arith.addf %154, %186 : vector<32x128xf32>
    %c1_29 = arith.constant 1 : index
    %c0_30 = arith.constant 0 : index
    %188 = vector.load %arg3[%c1_29, %c0_30] : memref<2x128xf32, #tpu.memory_space<vmem>>, vector<1x128xf32>
    %189 = vector.shape_cast %188 : vector<1x128xf32> to vector<128xf32>
    %190 = vector.shape_cast %189 : vector<128xf32> to vector<1x128xf32>
    %191 = vector.broadcast %190 : vector<1x128xf32> to vector<32x128xf32>
    %192 = arith.addf %187, %191 : vector<32x128xf32>
    %cst_31 = arith.constant 0.000000e+00 : f32
    %193 = vector.broadcast %cst_31 : f32 to vector<32x128xf32>
    %194 = arith.subf %193, %192 : vector<32x128xf32>
    %195 = math.exp %194 : vector<32x128xf32>
    %cst_32 = arith.constant 1.000000e+00 : f32
    %196 = vector.broadcast %cst_32 : f32 to vector<32x128xf32>
    %197 = arith.addf %196, %195 : vector<32x128xf32>
    %198 = arith.divf %192, %197 : vector<32x128xf32>
    %c1_33 = arith.constant 1 : index
    %c0_34 = arith.constant 0 : index
    %c0_35 = arith.constant 0 : index
    %199 = vector.load %arg6[%c1_33, %c0_34, %c0_35] : memref<2x32x128xf32, #tpu.memory_space<vmem>>, vector<1x32x128xf32>
    %200 = vector.shape_cast %199 : vector<1x32x128xf32> to vector<32x128xf32>
    %201 = vector.shape_cast %198 : vector<32x128xf32> to vector<1x32x128xf32>
    tpu.vector_store %arg6[%c1_33, %c0_34, %c0_35], %201 {strides = array<i32>} : memref<2x32x128xf32, #tpu.memory_space<vmem>>, vector<1x32x128xf32>,
    return
  }
  func.func @transform_0(%arg0: i32) -> (i32, i32) {
    %c0_i32 = arith.constant 0 : i32
    %c0_i32_0 = arith.constant 0 : i32
    %c0_i32_1 = arith.constant 0 : i32
    return %c0_i32, %c0_i32_0 : i32, i32
  }
  func.func @transform_1(%arg0: i32) -> (i32, i32) {
    %c0_i32 = arith.constant 0 : i32
    %c0_i32_0 = arith.constant 0 : i32
    %c0_i32_1 = arith.constant 0 : i32
    return %c0_i32, %c0_i32_0 : i32, i32
  }
  func.func @transform_2(%arg0: i32) -> (i32, i32) {
    %c0_i32 = arith.constant 0 : i32
    %c0_i32_0 = arith.constant 0 : i32
    %c0_i32_1 = arith.constant 0 : i32
    return %c0_i32, %c0_i32_0 : i32, i32
  }
  func.func @transform_3(%arg0: i32) -> (i32, i32) {
    %c0_i32 = arith.constant 0 : i32
    %c0_i32_0 = arith.constant 0 : i32
    %c0_i32_1 = arith.constant 0 : i32
    return %c0_i32, %c0_i32_0 : i32, i32
  }
  func.func @transform_4(%arg0: i32) -> (i32, i32, i32) {
    %c0_i32 = arith.constant 0 : i32
    %c0_i32_0 = arith.constant 0 : i32
    %c0_i32_1 = arith.constant 0 : i32
    %c0_i32_2 = arith.constant 0 : i32
    return %c0_i32, %c0_i32_0, %c0_i32_1 : i32, i32, i32
  }
  func.func @transform_5(%arg0: i32) -> (i32, i32, i32) {
    %c0_i32 = arith.constant 0 : i32
    %c0_i32_0 = arith.constant 0 : i32
    %c0_i32_1 = arith.constant 0 : i32
    %c0_i32_2 = arith.constant 0 : i32
    return %c0_i32, %c0_i32_0, %c0_i32_1 : i32, i32, i32
  }
}

</mosaic_0001>

<llo_original>
// kernel: tile.21
$region0: #{tile.21}
  #allocation0 [shape = 's32[1]{0}', space=sflag, size = 0x4, scoped, tag = 'scoped memory for tile.21']
  %s0 = inlined_call_operand.vmem [shape: f32[8], index: 0, kind: input, shape index: {}]
  %s1 = inlined_call_operand.vmem [shape: f32[16,8], index: 1, kind: output, shape index: {}]
  // Predicated region
  $region2: #{tile.21} parent=0 // pred_check
    _
  $region3: #{tile.21} parent=0 // pred_check_branch
    %3 = sbr.rel (0) target = $region5
  $region4: #{tile.21} parent=0 // pred_region
    _
  $region5: #{tile.21} parent=0 // pred_fallthru
    _
  %v4 = vld [vmem:[%s0] ss:$0 sm:$0xff]
  %5 = vst [vmem:[%s1] sm:$0xff] %v4
  %s6 = scalar_lea.vmem %s1, 8
  %7 = vst [vmem:[%s6] sm:$0xff] %v4

// kernel: tile.26
$region0: #{tile.26}
  %s0 = inlined_call_operand.vmem [shape: f32[16,8], index: 0, kind: input, shape index: {}]
  %s1 = inlined_call_operand.vmem [shape: f32[1,128], index: 1, kind: output, shape index: {}]
  $region1: #{tile.26} parent=0
    #allocation0 [shape = 'u8[4096]{0}', space=vmem, size = 0x1000, scoped, tag = 'scoped mem for output reshape']
    %v2 = vld [vmem:[%s0] sm:$0x1]
    %vm3 = vcmask 64512
    %4 = vst.msk [vmem:[#allocation0] sm:$0x1] %vm3, %v2
    %s5 = scalar_lea.vmem %s0, 15
    %v6 = vld [vmem:[%s5] sm:$0x1]
    %7 = vrot.lane.b32.xlu0 %v6, 120
    %v8 = vpop.permute.xlu0 %7
    %vm9 = vcmask 1048512
    %10 = vst.msk [vmem:[#allocation0] sm:$0x1] %vm9, %v8
    %s11 = scalar_lea.vmem %s0, 14
    %v12 = vld [vmem:[%s11] sm:$0x1]
    %13 = vrot.lane.b32.xlu0 %v12, 112
    %v14 = vpop.permute.xlu0 %13
    %vm15 = vcmask 982912
    %16 = vst.msk [vmem:[#allocation0] sm:$0x1] %vm15, %v14
    %s17 = scalar_lea.vmem %s0, 13
    %v18 = vld [vmem:[%s17] sm:$0x1]
    %19 = vrot.lane.b32.xlu0 %v18, 104
    %v20 = vpop.permute.xlu0 %19
    %vm21 = vcmask 917312
    %22 = vst.msk [vmem:[#allocation0] sm:$0x1] %vm21, %v20
    %s23 = scalar_lea.vmem %s0, 12
    %v24 = vld [vmem:[%s23] sm:$0x1]
    %25 = vrot.lane.b32.xlu0 %v24, 96
    %v26 = vpop.permute.xlu0 %25
    %vm27 = vcmask 851712
    %28 = vst.msk [vmem:[#allocation0] sm:$0x1] %vm27, %v26
    %s29 = scalar_lea.vmem %s0, 11
    %v30 = vld [vmem:[%s29] sm:$0x1]
    %31 = vrot.lane.b32.xlu0 %v30, 88
    %v32 = vpop.permute.xlu0 %31
    %vm33 = vcmask 786112
    %34 = vst.msk [vmem:[#allocation0] sm:$0x1] %vm33, %v32
    %s35 = scalar_lea.vmem %s0, 10
    %v36 = vld [vmem:[%s35] sm:$0x1]
    %37 = vrot.lane.b32.xlu0 %v36, 80
    %v38 = vpop.permute.xlu0 %37
    %vm39 = vcmask 720512
    %40 = vst.msk [vmem:[#allocation0] sm:$0x1] %vm39, %v38
    %s41 = scalar_lea.vmem %s0, 9
    %v42 = vld [vmem:[%s41] sm:$0x1]
    %43 = vrot.lane.b32.xlu0 %v42, 72
    %v44 = vpop.permute.xlu0 %43
    %vm45 = vcmask 654912
    %46 = vst.msk [vmem:[#allocation0] sm:$0x1] %vm45, %v44
    %s47 = scalar_lea.vmem %s0, 8
    %v48 = vld [vmem:[%s47] sm:$0x1]
    %49 = vrot.lane.b32.xlu0 %v48, 64
    %v50 = vpop.permute.xlu0 %49
    %vm51 = vcmask 589312
    %52 = vst.msk [vmem:[#allocation0] sm:$0x1] %vm51, %v50
    %s53 = scalar_lea.vmem %s0, 7
    %v54 = vld [vmem:[%s53] sm:$0x1]
    %55 = vrot.lane.b32.xlu0 %v54, 56
    %v56 = vpop.permute.xlu0 %55
    %vm57 = vcmask 523712
    %58 = vst.msk [vmem:[#allocation0] sm:$0x1] %vm57, %v56
    %s59 = scalar_lea.vmem %s0, 6
    %v60 = vld [vmem:[%s59] sm:$0x1]
    %61 = vrot.lane.b32.xlu0 %v60, 48
    %v62 = vpop.permute.xlu0 %61
    %vm63 = vcmask 458112
    %64 = vst.msk [vmem:[#allocation0] sm:$0x1] %vm63, %v62
    %s65 = scalar_lea.vmem %s0, 5
    %v66 = vld [vmem:[%s65] sm:$0x1]
    %67 = vrot.lane.b32.xlu0 %v66, 40
    %v68 = vpop.permute.xlu0 %67
    %vm69 = vcmask 392512
    %70 = vst.msk [vmem:[#allocation0] sm:$0x1] %vm69, %v68
    %s71 = scalar_lea.vmem %s0, 4
    %v72 = vld [vmem:[%s71] sm:$0x1]
    %73 = vrot.lane.b32.xlu0 %v72, 32
    %v74 = vpop.permute.xlu0 %73
    %vm75 = vcmask 326912
    %76 = vst.msk [vmem:[#allocation0] sm:$0x1] %vm75, %v74
    %s77 = scalar_lea.vmem %s0, 3
    %v78 = vld [vmem:[%s77] sm:$0x1]
    %79 = vrot.lane.b32.xlu0 %v78, 24
    %v80 = vpop.permute.xlu0 %79
    %vm81 = vcmask 261312
    %82 = vst.msk [vmem:[#allocation0] sm:$0x1] %vm81, %v80
    %s83 = scalar_lea.vmem %s0, 2
    %v84 = vld [vmem:[%s83] sm:$0x1]
    %85 = vrot.lane.b32.xlu0 %v84, 16
    %v86 = vpop.permute.xlu0 %85
    %vm87 = vcmask 195712
    %88 = vst.msk [vmem:[#allocation0] sm:$0x1] %vm87, %v86
    %s89 = scalar_lea.vmem %s0, 1
    %v90 = vld [vmem:[%s89] sm:$0x1]
    %91 = vrot.lane.b32.xlu0 %v90, 8
    %v92 = vpop.permute.xlu0 %91
    %vm93 = vcmask 130112
    %94 = vst.msk [vmem:[#allocation0] sm:$0x1] %vm93, %v92
    %s96 = sshllo.u32 0, 1
    %v98 = vld [vmem:[#allocation0] sm:%s96]
    %s99 = sshllo.u32 0, 1
    %100 = vst [vmem:[%s1] sm:%s99] %v98

// kernel: mul.35
$region0: #{mul.35}
  #allocation0 [shape = 's32[1]{0}', space=sflag, size = 0x4, scoped, tag = 'scoped memory for mul.35']
  %s0 = inlined_call_operand.vmem [shape: f32[25,128], index: 0, kind: input, shape index: {}]
  %s1 = inlined_call_operand.vmem [shape: f32[25,128], index: 1, kind: input, shape index: {}]
  %s2 = inlined_call_operand.vmem [shape: f32[25,128], index: 2, kind: output, shape index: {}]
  %v3 = vld [vmem:[%s0] sm:$0xff]
  %v4 = vld [vmem:[%s1] sm:$0xff]
  %5 = xla_tuple %v3, %v4
  %6 = xla_tuple %5
  %v7 = vmul.f32 %v3, %v4
  %8 = xla_tuple %v7
  %9 = vst [vmem:[%s2] sm:$0xff] %v7
  %s10 = scalar_lea.vmem %s0, 8
  %v11 = vld [vmem:[%s10] sm:$0xff]
  %s12 = scalar_lea.vmem %s1, 8
  %v13 = vld [vmem:[%s12] sm:$0xff]
  %14 = xla_tuple %v11, %v13
  %15 = xla_tuple %14
  %v16 = vmul.f32 %v11, %v13
  %17 = xla_tuple %v16
  %s18 = scalar_lea.vmem %s2, 8
  %19 = vst [vmem:[%s18] sm:$0xff] %v16
  %s20 = scalar_lea.vmem %s0, 16
  %v21 = vld [vmem:[%s20] sm:$0xff]
  %s22 = scalar_lea.vmem %s1, 16
  %v23 = vld [vmem:[%s22] sm:$0xff]
  %24 = xla_tuple %v21, %v23
  %25 = xla_tuple %24
  %v26 = vmul.f32 %v21, %v23
  %27 = xla_tuple %v26
  %s28 = scalar_lea.vmem %s2, 16
  %29 = vst [vmem:[%s28] sm:$0xff] %v26
  %s30 = scalar_lea.vmem %s0, 24
  %v31 = vld [vmem:[%s30] sm:$0xff]
  %s32 = scalar_lea.vmem %s1, 24
  %v33 = vld [vmem:[%s32] sm:$0xff]
  %34 = xla_tuple %v31, %v33
  %35 = xla_tuple %34
  %v36 = vmul.f32 %v31, %v33
  %37 = xla_tuple %v36
  %s38 = scalar_lea.vmem %s2, 24
  %39 = vst [vmem:[%s38] sm:$0xff] %v36

// kernel: tile.35
$region0: #{tile.35}
  %s0 = inlined_call_operand.vmem [shape: f32[5,5,128], index: 0, kind: input, shape index: {}]
  %s1 = inlined_call_operand.vmem [shape: f32[25,128], index: 1, kind: output, shape index: {}]
  %v2 = vld [vmem:[%s0] sm:$0x1f]
  %3 = vst [vmem:[%s1] sm:$0x1f] %v2
  %s4 = scalar_lea.vmem %s0, 8
  %v5 = vld [vmem:[%s4] sm:$0x1f]
  %s6 = scalar_lea.vmem %s1, 5
  %7 = vst [vmem:[%s6] sm:$0x1f] %v5
  %s8 = scalar_lea.vmem %s0, 16
  %v9 = vld [vmem:[%s8] sm:$0x1f]
  %s10 = scalar_lea.vmem %s1, 10
  %11 = vst [vmem:[%s10] sm:$0x1f] %v9
  %s12 = scalar_lea.vmem %s0, 24
  %v13 = vld [vmem:[%s12] sm:$0x1f]
  %s14 = scalar_lea.vmem %s1, 15
  %15 = vst [vmem:[%s14] sm:$0x1f] %v13
  %s16 = scalar_lea.vmem %s0, 32
  %v17 = vld [vmem:[%s16] sm:$0x1f]
  %s18 = scalar_lea.vmem %s1, 20
  %19 = vst [vmem:[%s18] sm:$0x1f] %v17

// kernel: ghostconv_forward.1
$region0: #{ghostconv_forward.1}
  #allocation0 [shape = 'u32[]', space=smem, size = 0x4, offset = 0x4, fixed_abs, tag = 'smem constant byte address 0x4 - core index']
  #allocation1 [shape = 'u32[144,128]{1,0:T(1,128)}', space=vmem, size = 0x12000, scoped, tag = 'internal scratch']
  %s0 = inlined_call_operand.vmem [shape: f32[32,64], index: 0, kind: input, shape index: {}]
  %s1 = inlined_call_operand.vmem [shape: f32[64,128], index: 1, kind: input, shape index: {}]
  %s2 = inlined_call_operand.vmem [shape: f32[2,128], index: 2, kind: input, shape index: {}]
  %s3 = inlined_call_operand.vmem [shape: f32[25,128], index: 3, kind: input, shape index: {}]
  %s4 = inlined_call_operand.vmem [shape: f32[5,32,32], index: 4, kind: input, shape index: {}]
  %s5 = inlined_call_operand.vmem [shape: f32[2,32,128], index: 5, kind: output, shape index: {}]
  %s6 = sld [smem:[#allocation0]]
  $region30: #{ghostconv_forward.1} parent=0
    _
  %s8 = ssub.s32 1, %s6
  %s9 = scalar_select 0, %s8, %s6
  // Predicated region
  $region2: #{ghostconv_forward.1} parent=0 // pred_check
    _
  $region3: #{ghostconv_forward.1} parent=0 // pred_check_branch
    %11 = sbr.rel (0) target = $region5
  $region4: #{ghostconv_forward.1} parent=0 // pred_region
    _
  $region5: #{ghostconv_forward.1} parent=0 // pred_fallthru
    _
  // Predicated region
  $region6: #{ghostconv_forward.1} parent=0 // pred_check
    _
  $region7: #{ghostconv_forward.1} parent=0 // pred_check_branch
    %13 = sbr.rel (0) target = $region9
  $region8: #{ghostconv_forward.1} parent=0 // pred_region
    _
  $region9: #{ghostconv_forward.1} parent=0 // pred_fallthru
    _
  // Predicated region
  $region10: #{ghostconv_forward.1} parent=0 // pred_check
    _
  $region11: #{ghostconv_forward.1} parent=0 // pred_check_branch
    %15 = sbr.rel (0) target = $region13
  $region12: #{ghostconv_forward.1} parent=0 // pred_region
    _
  $region13: #{ghostconv_forward.1} parent=0 // pred_fallthru
    _
  // Predicated region
  $region14: #{ghostconv_forward.1} parent=0 // pred_check
    _
  $region15: #{ghostconv_forward.1} parent=0 // pred_check_branch
    %17 = sbr.rel (0) target = $region17
  $region16: #{ghostconv_forward.1} parent=0 // pred_region
    _
  $region17: #{ghostconv_forward.1} parent=0 // pred_fallthru
    _
  // Predicated region
  $region18: #{ghostconv_forward.1} parent=0 // pred_check
    _
  $region19: #{ghostconv_forward.1} parent=0 // pred_check_branch
    %19 = sbr.rel (0) target = $region21
  $region20: #{ghostconv_forward.1} parent=0 // pred_region
    _
  $region21: #{ghostconv_forward.1} parent=0 // pred_fallthru
    _
  %v20 = vld [vmem:[%s0] sm:$0xff]
  %v21 = vld [vmem:[%s0 + $0x8] sm:$0xff]
  %v22 = vld [vmem:[%s0 + $0x10] sm:$0xff]
  %v23 = vld [vmem:[%s0 + $0x18] sm:$0xff]
  %v24 = vld [vmem:[%s1] sm:$0xff]
  %v25 = vld [vmem:[%s1 + $0x8] sm:$0xff]
  %v26 = vld [vmem:[%s1 + $0x10] sm:$0xff]
  %v27 = vld [vmem:[%s1 + $0x18] sm:$0xff]
  %v28 = vld [vmem:[%s1 + $0x20] sm:$0xff]
  %v29 = vld [vmem:[%s1 + $0x28] sm:$0xff]
  %v30 = vld [vmem:[%s1 + $0x30] sm:$0xff]
  %v31 = vld [vmem:[%s1 + $0x38] sm:$0xff]
  %v32 = vld [vmem:[%s2] sm:$0x1]
  %v33 = vlaneseq
  %v34 = vshrl.u32 %v33, 7
  %v35 = vsub.s32 0, %v34
  %v36 = vrot.slane %v32, %v35
  %vm37 = vcmask 523264
  %v39 = vsel %vm37, %v20, 0
  %v42 = vsel %vm37, %v21, 0
  %v45 = vsel %vm37, %v22, 0
  %v48 = vsel %vm37, %v23, 0
  %50 = vmatprep.subr.mxu0 0.0
  %51 = vmatpush1.msra.mxu0 %v24
  %52 = vmatprep.subr.mxu0 0.0
  %53 = vmatpush1.msra.mxu0 %v25
  %54 = vmatprep.subr.mxu0 0.0
  %55 = vmatpush1.msra.mxu0 %v26
  %56 = vmatprep.subr.mxu0 0.0
  %57 = vmatpush1.msra.mxu0 %v27
  %58 = vmatprep.subr.mxu0 0.0
  %59 = vmatpush1.msra.mxu0 %v28
  %60 = vmatprep.subr.mxu0 0.0
  %61 = vmatpush1.msra.mxu0 %v29
  %62 = vmatprep.subr.mxu0 0.0
  %63 = vmatpush1.msra.mxu0 %v30
  %64 = vmatprep.subr.mxu0 0.0
  %65 = vmatpush1.msra.mxu0 %v31
  %66 = vmatprep.subr.mxu0 0.0
  %67 = vmatpush1.msra.mxu0 0.0
  %68 = vmatprep.subr.mxu0 0.0
  %69 = vmatpush1.msra.mxu0 0.0
  %70 = vmatprep.subr.mxu0 0.0
  %71 = vmatpush1.msra.mxu0 0.0
  %72 = vmatprep.subr.mxu0 0.0
  %73 = vmatpush1.msra.mxu0 0.0
  %74 = vmatprep.subr.mxu0 0.0
  %75 = vmatpush1.msra.mxu0 0.0
  %76 = vmatprep.subr.mxu0 0.0
  %77 = vmatpush1.msra.mxu0 0.0
  %78 = vmatprep.subr.mxu0 0.0
  %79 = vmatpush1.msra.mxu0 0.0
  %80 = vmatprep.subr.mxu0 0.0
  %81 = vmatpush1.msra.mxu0 0.0
  %82 = vmatprep.subr.mxu0 0.0
  %83 = vmatpush1.msra.mxu0 0.0
  %84 = vmatprep.subr.mxu0 0.0
  %85 = vmatpush1.msra.mxu0 0.0
  %86 = vmatprep.subr.mxu0 0.0
  %87 = vmatpush1.msra.mxu0 0.0
  %88 = vmatprep.subr.mxu0 0.0
  %89 = vmatpush1.msra.mxu0 0.0
  %90 = vmatprep.subr.mxu0 0.0
  %91 = vmatpush1.msra.mxu0 0.0
  %92 = vmatprep.subr.mxu0 0.0
  %93 = vmatpush1.msra.mxu0 0.0
  %94 = vmatprep.subr.mxu0 0.0
  %95 = vmatpush1.msra.mxu0 0.0
  %96 = vmatprep.subr.mxu0 0.0
  %97 = vmatpush1.msra.mxu0 0.0
  %98 = vmatprep.subr.mxu0 0.0
  %99 = vmatpush1.msra.mxu0 0.0
  %100 = vmatprep.subr.mxu0 0.0
  %101 = vmatpush1.msra.mxu0 0.0
  %102 = vmatprep.subr.mxu0 0.0
  %103 = vmatpush1.msra.mxu0 0.0
  %104 = vmatprep.subr.mxu0 0.0
  %105 = vmatpush1.msra.mxu0 0.0
  %106 = vmatprep.subr.mxu0 0.0
  %107 = vmatpush1.msra.mxu0 0.0
  %108 = vmatprep.subr.mxu0 0.0
  %109 = vmatpush1.msra.mxu0 0.0
  %110 = vmatprep.subr.mxu0 0.0
  %111 = vmatpush1.msra.mxu0 0.0
  %112 = vmatprep.subr.mxu0 0.0
  %113 = vmatpush1.msra.mxu0 0.0
  %114 = vmatprep.mubr.f32.mxu0 0.0
  %115 = vmatmul.mubr.f32.gmra.mrb[0].mxu0 %v39
  %v116 = vpop.f32.mrb[0].mxu0
  %v117 = vadd.f32 %v36, %v116
  %v118 = vpop.f32.mrb[0].mxu0
  %119 = vmatprep.mubr.f32.mxu0 0.0
  %120 = vmatmul.mubr.f32.gmra.mrb[0].mxu0 %v42
  %v121 = vpop.f32.mrb[0].mxu0
  %v122 = vadd.f32 %v36, %v121
  %v123 = vpop.f32.mrb[0].mxu0
  %124 = vmatprep.mubr.f32.mxu0 0.0
  %125 = vmatmul.mubr.f32.gmra.mrb[0].mxu0 %v45
  %v126 = vpop.f32.mrb[0].mxu0
  %v127 = vadd.f32 %v36, %v126
  %v128 = vpop.f32.mrb[0].mxu0
  %129 = vmatprep.mubr.f32.mxu0 0.0
  %130 = vmatmul.mubr.f32.gmra.mrb[0].mxu0 %v48
  %v131 = vpop.f32.mrb[0].mxu0
  %v132 = vadd.f32 %v36, %v131
  %v133 = vpop.f32.mrb[0].mxu0
  %134 = vdwg.mxu0
  %v135 = vsub.f32 0.0, %v117
  %v136 = vsub.f32 0.0, %v122
  %v137 = vsub.f32 0.0, %v127
  %v138 = vsub.f32 0.0, %v132
  %v139 = vmul.f32 %v135, 1.442695
  %v140 = vpow.pop %v139
  %v141 = vmul.f32 %v136, 1.442695
  %v142 = vpow.pop %v141
  %v143 = vmul.f32 %v137, 1.442695
  %v144 = vpow.pop %v143
  %v145 = vmul.f32 %v138, 1.442695
  %v146 = vpow.pop %v145
  %v147 = vadd.f32 %v140, 1.0
  %v148 = vadd.f32 %v142, 1.0
  %v149 = vadd.f32 %v144, 1.0
  %v150 = vadd.f32 %v146, 1.0
  %v151 = vrcp.pop %v147
  %v152 = vmul.f32 %v117, %v151
  %v153 = vrcp.pop %v148
  %v154 = vmul.f32 %v122, %v153
  %v155 = vrcp.pop %v149
  %v156 = vmul.f32 %v127, %v155
  %v157 = vrcp.pop %v150
  %v158 = vmul.f32 %v132, %v157
  %159 = vst [vmem:[%s5] sm:$0xff] %v152
  %160 = vst [vmem:[%s5 + $0x8] sm:$0xff] %v154
  %161 = vst [vmem:[%s5 + $0x10] sm:$0xff] %v156
  %162 = vst [vmem:[%s5 + $0x18] sm:$0xff] %v158
  %163 = vrot.lane.b32.xlu0 %v152, 16
  %v164 = vpop.permute.xlu0 %163
  %165 = vrot.lane.b32.xlu0 %v154, 16
  %v166 = vpop.permute.xlu0 %165
  %167 = vrot.lane.b32.xlu0 %v156, 16
  %v168 = vpop.permute.xlu0 %167
  %169 = vrot.lane.b32.xlu0 %v158, 16
  %v170 = vpop.permute.xlu0 %169
  %171 = vrot.lane.b32.xlu0 %v152, 8
  %v172 = vpop.permute.xlu0 %171
  %173 = vrot.lane.b32.xlu0 %v154, 8
  %v174 = vpop.permute.xlu0 %173
  %175 = vrot.lane.b32.xlu0 %v156, 8
  %v176 = vpop.permute.xlu0 %175
  %177 = vrot.lane.b32.xlu0 %v158, 8
  %v178 = vpop.permute.xlu0 %177
  %179 = vrot.lane.b32.xlu0 %v152, 120
  %v180 = vpop.permute.xlu0 %179
  %181 = vrot.lane.b32.xlu0 %v154, 120
  %v182 = vpop.permute.xlu0 %181
  %183 = vrot.lane.b32.xlu0 %v156, 120
  %v184 = vpop.permute.xlu0 %183
  %185 = vrot.lane.b32.xlu0 %v158, 120
  %v186 = vpop.permute.xlu0 %185
  %187 = vrot.lane.b32.xlu0 %v152, 112
  %v188 = vpop.permute.xlu0 %187
  %189 = vrot.lane.b32.xlu0 %v154, 112
  %v190 = vpop.permute.xlu0 %189
  %191 = vrot.lane.b32.xlu0 %v156, 112
  %v192 = vpop.permute.xlu0 %191
  %193 = vrot.lane.b32.xlu0 %v158, 112
  %v194 = vpop.permute.xlu0 %193
  %v195 = vld [vmem:[%s3] sm:$0xff]
  %v196 = vld [vmem:[%s3 + $0x8] sm:$0xff]
  %v197 = vld [vmem:[%s3 + $0x10] sm:$0xff]
  %v198 = vld [vmem:[%s3 + $0x18] sm:$0x1]
  %v199 = vlaneseq
  %v200 = vshrl.u32 %v199, 7
  %v201 = vsub.s32 0, %v200
  %v202 = vrot.slane %v195, %v201
  %v203 = vmul.f32 %v164, %v202
  %v204 = vmul.f32 %v166, %v202
  %v205 = vmul.f32 %v168, %v202
  %v206 = vmul.f32 %v170, %v202
  %v207 = vlaneseq
  %v208 = vshrl.u32 %v207, 7
  %v209 = vsub.s32 1, %v208
  %v210 = vrot.slane %v195, %v209
  %v211 = vmul.f32 %v172, %v210
  %v212 = vmul.f32 %v174, %v210
  %v213 = vmul.f32 %v176, %v210
  %v214 = vmul.f32 %v178, %v210
  %v215 = vadd.f32 %v203, %v211
  %v216 = vadd.f32 %v204, %v212
  %v217 = vadd.f32 %v205, %v213
  %v218 = vadd.f32 %v206, %v214
  %v219 = vlaneseq
  %v220 = vshrl.u32 %v219, 7
  %v221 = vsub.s32 2, %v220
  %v222 = vrot.slane %v195, %v221
  %v223 = vmul.f32 %v152, %v222
  %v224 = vmul.f32 %v154, %v222
  %v225 = vmul.f32 %v156, %v222
  %v226 = vmul.f32 %v158, %v222
  %v227 = vadd.f32 %v215, %v223
  %v228 = vadd.f32 %v216, %v224
  %v229 = vadd.f32 %v217, %v225
  %v230 = vadd.f32 %v218, %v226
  %v231 = vlaneseq
  %v232 = vshrl.u32 %v231, 7
  %v233 = vsub.s32 3, %v232
  %v234 = vrot.slane %v195, %v233
  %v235 = vmul.f32 %v180, %v234
  %v236 = vmul.f32 %v182, %v234
  %v237 = vmul.f32 %v184, %v234
  %v238 = vmul.f32 %v186, %v234
  %v239 = vadd.f32 %v227, %v235
  %v240 = vadd.f32 %v228, %v236
  %v241 = vadd.f32 %v229, %v237
  %v242 = vadd.f32 %v230, %v238
  %v243 = vlaneseq
  %v244 = vshrl.u32 %v243, 7
  %v245 = vsub.s32 4, %v244
  %v246 = vrot.slane %v195, %v245
  %v247 = vmul.f32 %v188, %v246
  %v248 = vmul.f32 %v190, %v246
  %v249 = vmul.f32 %v192, %v246
  %v250 = vmul.f32 %v194, %v246
  %v251 = vadd.f32 %v239, %v247
  %v252 = vadd.f32 %v240, %v248
  %v253 = vadd.f32 %v241, %v249
  %v254 = vadd.f32 %v242, %v250
  %v255 = vld [vmem:[%s4] sm:$0xff]
  %v256 = vld [vmem:[%s4 + $0x8] sm:$0xff]
  %v257 = vld [vmem:[%s4 + $0x10] sm:$0xff]
  %v258 = vld [vmem:[%s4 + $0x18] sm:$0xff]
  %v259 = vlaneseq
  %v260 = vshrl.u32 %v259, 7
  %v261 = vsub.s32 5, %v260
  %v262 = vrot.slane %v195, %v261
  %v263 = vmul.f32 %v164, %v262
  %v264 = vmul.f32 %v166, %v262
  %v265 = vmul.f32 %v168, %v262
  %v266 = vmul.f32 %v170, %v262
  %v267 = vlaneseq
  %v268 = vshrl.u32 %v267, 7
  %v269 = vsub.s32 6, %v268
  %v270 = vrot.slane %v195, %v269
  %v271 = vmul.f32 %v172, %v270
  %v272 = vmul.f32 %v174, %v270
  %v273 = vmul.f32 %v176, %v270
  %v274 = vmul.f32 %v178, %v270
  %v275 = vadd.f32 %v263, %v271
  %v276 = vadd.f32 %v264, %v272
  %v277 = vadd.f32 %v265, %v273
  %v278 = vadd.f32 %v266, %v274
  %v279 = vlaneseq
  %v280 = vshrl.u32 %v279, 7
  %v281 = vsub.s32 7, %v280
  %v282 = vrot.slane %v195, %v281
  %v283 = vmul.f32 %v152, %v282
  %v284 = vmul.f32 %v154, %v282
  %v285 = vmul.f32 %v156, %v282
  %v286 = vmul.f32 %v158, %v282
  %v287 = vadd.f32 %v275, %v283
  %v288 = vadd.f32 %v276, %v284
  %v289 = vadd.f32 %v277, %v285
  %v290 = vadd.f32 %v278, %v286
  %v291 = vlaneseq
  %v292 = vshrl.u32 %v291, 7
  %v293 = vsub.s32 0, %v292
  %v294 = vrot.slane %v196, %v293
  %v295 = vmul.f32 %v180, %v294
  %v296 = vmul.f32 %v182, %v294
  %v297 = vmul.f32 %v184, %v294
  %v298 = vmul.f32 %v186, %v294
  %v299 = vadd.f32 %v287, %v295
  %v300 = vadd.f32 %v288, %v296
  %v301 = vadd.f32 %v289, %v297
  %v302 = vadd.f32 %v290, %v298
  %v303 = vlaneseq
  %v304 = vshrl.u32 %v303, 7
  %v305 = vsub.s32 1, %v304
  %v306 = vrot.slane %v196, %v305
  %v307 = vmul.f32 %v188, %v306
  %v308 = vmul.f32 %v190, %v306
  %v309 = vmul.f32 %v192, %v306
  %v310 = vmul.f32 %v194, %v306
  %v311 = vadd.f32 %v299, %v307
  %v312 = vadd.f32 %v300, %v308
  %v313 = vadd.f32 %v301, %v309
  %v314 = vadd.f32 %v302, %v310
  %s315 = scalar_lea.vmem %s4, 32
  %v316 = vld [vmem:[%s315] sm:$0xff]
  %v317 = vld [vmem:[%s315 + $0x8] sm:$0xff]
  %v318 = vld [vmem:[%s315 + $0x10] sm:$0xff]
  %v319 = vld [vmem:[%s315 + $0x18] sm:$0xff]
  %vm320 = vcmask 261120
  %v322 = vsel %vm320, %v316, 0
  %v325 = vsel %vm320, %v317, 0
  %v328 = vsel %vm320, %v318, 0
  %v331 = vsel %vm320, %v319, 0
  %333 = vmatprep.subr.mxu0 0.0
  %334 = vmatpush1.msra.mxu0 %v311
  %335 = vmatprep.subr.mxu0 0.0
  %336 = vmatpush1.msra.mxu0 %v312
  %337 = vmatprep.subr.mxu0 0.0
  %338 = vmatpush1.msra.mxu0 %v313
  %339 = vmatprep.subr.mxu0 0.0
  %340 = vmatpush1.msra.mxu0 %v314
  %341 = vmatprep.subr.mxu0 0.0
  %342 = vmatpush1.msra.mxu0 0.0
  %343 = vmatprep.subr.mxu0 0.0
  %344 = vmatpush1.msra.mxu0 0.0
  %345 = vmatprep.subr.mxu0 0.0
  %346 = vmatpush1.msra.mxu0 0.0
  %347 = vmatprep.subr.mxu0 0.0
  %348 = vmatpush1.msra.mxu0 0.0
  %349 = vmatprep.subr.mxu0 0.0
  %350 = vmatpush1.msra.mxu0 0.0
  %351 = vmatprep.subr.mxu0 0.0
  %352 = vmatpush1.msra.mxu0 0.0
  %353 = vmatprep.subr.mxu0 0.0
  %354 = vmatpush1.msra.mxu0 0.0
  %355 = vmatprep.subr.mxu0 0.0
  %356 = vmatpush1.msra.mxu0 0.0
  %357 = vmatprep.subr.mxu0 0.0
  %358 = vmatpush1.msra.mxu0 0.0
  %359 = vmatprep.subr.mxu0 0.0
  %360 = vmatpush1.msra.mxu0 0.0
  %361 = vmatprep.subr.mxu0 0.0
  %362 = vmatpush1.msra.mxu0 0.0
  %363 = vmatprep.subr.mxu0 0.0
  %364 = vmatpush1.msra.mxu0 0.0
  %365 = vmatprep.subr.mxu0 0.0
  %366 = vmatpush1.msra.mxu0 0.0
  %367 = vmatprep.subr.mxu0 0.0
  %368 = vmatpush1.msra.mxu0 0.0
  %369 = vmatprep.subr.mxu0 0.0
  %370 = vmatpush1.msra.mxu0 0.0
  %371 = vmatprep.subr.mxu0 0.0
  %372 = vmatpush1.msra.mxu0 0.0
  %373 = vmatprep.subr.mxu0 0.0
  %374 = vmatpush1.msra.mxu0 0.0
  %375 = vmatprep.subr.mxu0 0.0
  %376 = vmatpush1.msra.mxu0 0.0
  %377 = vmatprep.subr.mxu0 0.0
  %378 = vmatpush1.msra.mxu0 0.0
  %379 = vmatprep.subr.mxu0 0.0
  %380 = vmatpush1.msra.mxu0 0.0
  %381 = vmatprep.subr.mxu0 0.0
  %382 = vmatpush1.msra.mxu0 0.0
  %383 = vmatprep.subr.mxu0 0.0
  %384 = vmatpush1.msra.mxu0 0.0
  %385 = vmatprep.subr.mxu0 0.0
  %386 = vmatpush1.msra.mxu0 0.0
  %387 = vmatprep.subr.mxu0 0.0
  %388 = vmatpush1.msra.mxu0 0.0
  %389 = vmatprep.subr.mxu0 0.0
  %390 = vmatpush1.msra.mxu0 0.0
  %391 = vmatprep.subr.mxu0 0.0
  %392 = vmatpush1.msra.mxu0 0.0
  %393 = vmatprep.subr.mxu0 0.0
  %394 = vmatpush1.msra.mxu0 0.0
  %395 = vmatprep.subr.mxu0 0.0
  %396 = vmatpush1.msra.mxu0 0.0
  %397 = vmatprep.mubr.f32.mxu0 0.0
  %398 = vmatmul.mubr.f32.gmra.mrb[0].mxu0 %v322
  %v399 = vpop.f32.mrb[0].mxu0
  %v400 = vadd.f32 0.0, %v399
  %v401 = vpop.f32.mrb[0].mxu0
  %402 = vmatprep.mubr.f32.mxu0 0.0
  %403 = vmatmul.mubr.f32.gmra.mrb[0].mxu0 %v325
  %v404 = vpop.f32.mrb[0].mxu0
  %v405 = vadd.f32 0.0, %v404
  %v406 = vpop.f32.mrb[0].mxu0
  %407 = vmatprep.mubr.f32.mxu0 0.0
  %408 = vmatmul.mubr.f32.gmra.mrb[0].mxu0 %v328
  %v409 = vpop.f32.mrb[0].mxu0
  %v410 = vadd.f32 0.0, %v409
  %v411 = vpop.f32.mrb[0].mxu0
  %412 = vmatprep.mubr.f32.mxu0 0.0
  %413 = vmatmul.mubr.f32.gmra.mrb[0].mxu0 %v331
  %v414 = vpop.f32.mrb[0].mxu0
  %v415 = vadd.f32 0.0, %v414
  %v416 = vpop.f32.mrb[0].mxu0
  %417 = vdwg.mxu0
  %v419 = vsel %vm320, %v255, 0
  %v422 = vsel %vm320, %v256, 0
  %v425 = vsel %vm320, %v257, 0
  %v428 = vsel %vm320, %v258, 0
  %430 = vmatprep.subr.mxu0 0.0
  %431 = vmatpush1.msra.mxu0 %v251
  %432 = vmatprep.subr.mxu0 0.0
  %433 = vmatpush1.msra.mxu0 %v252
  %434 = vmatprep.subr.mxu0 0.0
  %435 = vmatpush1.msra.mxu0 %v253
  %436 = vmatprep.subr.mxu0 0.0
  %437 = vmatpush1.msra.mxu0 %v254
  %438 = vmatprep.subr.mxu0 0.0
  %439 = vmatpush1.msra.mxu0 0.0
  %440 = vmatprep.subr.mxu0 0.0
  %441 = vmatpush1.msra.mxu0 0.0
  %442 = vmatprep.subr.mxu0 0.0
  %443 = vmatpush1.msra.mxu0 0.0
  %444 = vmatprep.subr.mxu0 0.0
  %445 = vmatpush1.msra.mxu0 0.0
  %446 = vmatprep.subr.mxu0 0.0
  %447 = vmatpush1.msra.mxu0 0.0
  %448 = vmatprep.subr.mxu0 0.0
  %449 = vmatpush1.msra.mxu0 0.0
  %450 = vmatprep.subr.mxu0 0.0
  %451 = vmatpush1.msra.mxu0 0.0
  %452 = vmatprep.subr.mxu0 0.0
  %453 = vmatpush1.msra.mxu0 0.0
  %454 = vmatprep.subr.mxu0 0.0
  %455 = vmatpush1.msra.mxu0 0.0
  %456 = vmatprep.subr.mxu0 0.0
  %457 = vmatpush1.msra.mxu0 0.0
  %458 = vmatprep.subr.mxu0 0.0
  %459 = vmatpush1.msra.mxu0 0.0
  %460 = vmatprep.subr.mxu0 0.0
  %461 = vmatpush1.msra.mxu0 0.0
  %462 = vmatprep.subr.mxu0 0.0
  %463 = vmatpush1.msra.mxu0 0.0
  %464 = vmatprep.subr.mxu0 0.0
  %465 = vmatpush1.msra.mxu0 0.0
  %466 = vmatprep.subr.mxu0 0.0
  %467 = vmatpush1.msra.mxu0 0.0
  %468 = vmatprep.subr.mxu0 0.0
  %469 = vmatpush1.msra.mxu0 0.0
  %470 = vmatprep.subr.mxu0 0.0
  %471 = vmatpush1.msra.mxu0 0.0
  %472 = vmatprep.subr.mxu0 0.0
  %473 = vmatpush1.msra.mxu0 0.0
  %474 = vmatprep.subr.mxu0 0.0
  %475 = vmatpush1.msra.mxu0 0.0
  %476 = vmatprep.subr.mxu0 0.0
  %477 = vmatpush1.msra.mxu0 0.0
  %478 = vmatprep.subr.mxu0 0.0
  %479 = vmatpush1.msra.mxu0 0.0
  %480 = vmatprep.subr.mxu0 0.0
  %481 = vmatpush1.msra.mxu0 0.0
  %482 = vmatprep.subr.mxu0 0.0
  %483 = vmatpush1.msra.mxu0 0.0
  %484 = vmatprep.subr.mxu0 0.0
  %485 = vmatpush1.msra.mxu0 0.0
  %486 = vmatprep.subr.mxu0 0.0
  %487 = vmatpush1.msra.mxu0 0.0
  %488 = vmatprep.subr.mxu0 0.0
  %489 = vmatpush1.msra.mxu0 0.0
  %490 = vmatprep.subr.mxu0 0.0
  %491 = vmatpush1.msra.mxu0 0.0
  %492 = vmatprep.subr.mxu0 0.0
  %493 = vmatpush1.msra.mxu0 0.0
  %494 = vmatprep.mubr.f32.mxu0 0.0
  %495 = vmatmul.mubr.f32.gmra.mrb[0].mxu0 %v419
  %v496 = vpop.f32.mrb[0].mxu0
  %v497 = vadd.f32 %v400, %v496
  %v498 = vpop.f32.mrb[0].mxu0
  %499 = vmatprep.mubr.f32.mxu0 0.0
  %500 = vmatmul.mubr.f32.gmra.mrb[0].mxu0 %v422
  %v501 = vpop.f32.mrb[0].mxu0
  %v502 = vadd.f32 %v405, %v501
  %v503 = vpop.f32.mrb[0].mxu0
  %504 = vmatprep.mubr.f32.mxu0 0.0
  %505 = vmatmul.mubr.f32.gmra.mrb[0].mxu0 %v425
  %v506 = vpop.f32.mrb[0].mxu0
  %v507 = vadd.f32 %v410, %v506
  %v508 = vpop.f32.mrb[0].mxu0
  %509 = vmatprep.mubr.f32.mxu0 0.0
  %510 = vmatmul.mubr.f32.gmra.mrb[0].mxu0 %v428
  %v511 = vpop.f32.mrb[0].mxu0
  %v512 = vadd.f32 %v415, %v511
  %v513 = vpop.f32.mrb[0].mxu0
  %514 = vdwg.mxu0
  %v515 = vlaneseq
  %v516 = vshrl.u32 %v515, 7
  %v517 = vsub.s32 2, %v516
  %v518 = vrot.slane %v196, %v517
  %v519 = vmul.f32 %v164, %v518
  %v520 = vmul.f32 %v166, %v518
  %v521 = vmul.f32 %v168, %v518
  %v522 = vmul.f32 %v170, %v518
  %v523 = vlaneseq
  %v524 = vshrl.u32 %v523, 7
  %v525 = vsub.s32 3, %v524
  %v526 = vrot.slane %v196, %v525
  %v527 = vmul.f32 %v172, %v526
  %v528 = vmul.f32 %v174, %v526
  %v529 = vmul.f32 %v176, %v526
  %v530 = vmul.f32 %v178, %v526
  %v531 = vadd.f32 %v519, %v527
  %v532 = vadd.f32 %v520, %v528
  %v533 = vadd.f32 %v521, %v529
  %v534 = vadd.f32 %v522, %v530
  %v535 = vlaneseq
  %v536 = vshrl.u32 %v535, 7
  %v537 = vsub.s32 4, %v536
  %v538 = vrot.slane %v196, %v537
  %v539 = vmul.f32 %v152, %v538
  %v540 = vmul.f32 %v154, %v538
  %v541 = vmul.f32 %v156, %v538
  %v542 = vmul.f32 %v158, %v538
  %v543 = vadd.f32 %v531, %v539
  %v544 = vadd.f32 %v532, %v540
  %v545 = vadd.f32 %v533, %v541
  %v546 = vadd.f32 %v534, %v542
  %v547 = vlaneseq
  %v548 = vshrl.u32 %v547, 7
  %v549 = vsub.s32 5, %v548
  %v550 = vrot.slane %v196, %v549
  %v551 = vmul.f32 %v180, %v550
  %v552 = vmul.f32 %v182, %v550
  %v553 = vmul.f32 %v184, %v550
  %v554 = vmul.f32 %v186, %v550
  %v555 = vadd.f32 %v543, %v551
  %v556 = vadd.f32 %v544, %v552
  %v557 = vadd.f32 %v545, %v553
  %v558 = vadd.f32 %v546, %v554
  %v559 = vlaneseq
  %v560 = vshrl.u32 %v559, 7
  %v561 = vsub.s32 6, %v560
  %v562 = vrot.slane %v196, %v561
  %v563 = vmul.f32 %v188, %v562
  %v564 = vmul.f32 %v190, %v562
  %v565 = vmul.f32 %v192, %v562
  %v566 = vmul.f32 %v194, %v562
  %v567 = vadd.f32 %v555, %v563
  %v568 = vadd.f32 %v556, %v564
  %v569 = vadd.f32 %v557, %v565
  %v570 = vadd.f32 %v558, %v566
  %s571 = scalar_lea.vmem %s4, 64
  %v572 = vld [vmem:[%s571] sm:$0xff]
  %v573 = vld [vmem:[%s571 + $0x8] sm:$0xff]
  %v574 = vld [vmem:[%s571 + $0x10] sm:$0xff]
  %v575 = vld [vmem:[%s571 + $0x18] sm:$0xff]
  %v577 = vsel %vm320, %v572, 0
  %v580 = vsel %vm320, %v573, 0
  %v583 = vsel %vm320, %v574, 0
  %v586 = vsel %vm320, %v575, 0
  %588 = vmatprep.subr.mxu0 0.0
  %589 = vmatpush1.msra.mxu0 %v567
  %590 = vmatprep.subr.mxu0 0.0
  %591 = vmatpush1.msra.mxu0 %v568
  %592 = vmatprep.subr.mxu0 0.0
  %593 = vmatpush1.msra.mxu0 %v569
  %594 = vmatprep.subr.mxu0 0.0
  %595 = vmatpush1.msra.mxu0 %v570
  %596 = vmatprep.subr.mxu0 0.0
  %597 = vmatpush1.msra.mxu0 0.0
  %598 = vmatprep.subr.mxu0 0.0
  %599 = vmatpush1.msra.mxu0 0.0
  %600 = vmatprep.subr.mxu0 0.0
  %601 = vmatpush1.msra.mxu0 0.0
  %602 = vmatprep.subr.mxu0 0.0
  %603 = vmatpush1.msra.mxu0 0.0
  %604 = vmatprep.subr.mxu0 0.0
  %605 = vmatpush1.msra.mxu0 0.0
  %606 = vmatprep.subr.mxu0 0.0
  %607 = vmatpush1.msra.mxu0 0.0
  %608 = vmatprep.subr.mxu0 0.0
  %609 = vmatpush1.msra.mxu0 0.0
  %610 = vmatprep.subr.mxu0 0.0
  %611 = vmatpush1.msra.mxu0 0.0
  %612 = vmatprep.subr.mxu0 0.0
  %613 = vmatpush1.msra.mxu0 0.0
  %614 = vmatprep.subr.mxu0 0.0
  %615 = vmatpush1.msra.mxu0 0.0
  %616 = vmatprep.subr.mxu0 0.0
  %617 = vmatpush1.msra.mxu0 0.0
  %618 = vmatprep.subr.mxu0 0.0
  %619 = vmatpush1.msra.mxu0 0.0
  %620 = vmatprep.subr.mxu0 0.0
  %621 = vmatpush1.msra.mxu0 0.0
  %622 = vmatprep.subr.mxu0 0.0
  %623 = vmatpush1.msra.mxu0 0.0
  %624 = vmatprep.subr.mxu0 0.0
  %625 = vmatpush1.msra.mxu0 0.0
  %626 = vmatprep.subr.mxu0 0.0
  %627 = vmatpush1.msra.mxu0 0.0
  %628 = vmatprep.subr.mxu0 0.0
  %629 = vmatpush1.msra.mxu0 0.0
  %630 = vmatprep.subr.mxu0 0.0
  %631 = vmatpush1.msra.mxu0 0.0
  %632 = vmatprep.subr.mxu0 0.0
  %633 = vmatpush1.msra.mxu0 0.0
  %634 = vmatprep.subr.mxu0 0.0
  %635 = vmatpush1.msra.mxu0 0.0
  %636 = vmatprep.subr.mxu0 0.0
  %637 = vmatpush1.msra.mxu0 0.0
  %638 = vmatprep.subr.mxu0 0.0
  %639 = vmatpush1.msra.mxu0 0.0
  %640 = vmatprep.subr.mxu0 0.0
  %641 = vmatpush1.msra.mxu0 0.0
  %642 = vmatprep.subr.mxu0 0.0
  %643 = vmatpush1.msra.mxu0 0.0
  %644 = vmatprep.subr.mxu0 0.0
  %645 = vmatpush1.msra.mxu0 0.0
  %646 = vmatprep.subr.mxu0 0.0
  %647 = vmatpush1.msra.mxu0 0.0
  %648 = vmatprep.subr.mxu0 0.0
  %649 = vmatpush1.msra.mxu0 0.0
  %650 = vmatprep.subr.mxu0 0.0
  %651 = vmatpush1.msra.mxu0 0.0
  %652 = vmatprep.mubr.f32.mxu0 0.0
  %653 = vmatmul.mubr.f32.gmra.mrb[0].mxu0 %v577
  %v654 = vpop.f32.mrb[0].mxu0
  %v655 = vadd.f32 0.0, %v654
  %v656 = vpop.f32.mrb[0].mxu0
  %657 = vmatprep.mubr.f32.mxu0 0.0
  %658 = vmatmul.mubr.f32.gmra.mrb[0].mxu0 %v580
  %v659 = vpop.f32.mrb[0].mxu0
  %v660 = vadd.f32 0.0, %v659
  %v661 = vpop.f32.mrb[0].mxu0
  %662 = vmatprep.mubr.f32.mxu0 0.0
  %663 = vmatmul.mubr.f32.gmra.mrb[0].mxu0 %v583
  %v664 = vpop.f32.mrb[0].mxu0
  %v665 = vadd.f32 0.0, %v664
  %v666 = vpop.f32.mrb[0].mxu0
  %667 = vmatprep.mubr.f32.mxu0 0.0
  %668 = vmatmul.mubr.f32.gmra.mrb[0].mxu0 %v586
  %v669 = vpop.f32.mrb[0].mxu0
  %v670 = vadd.f32 0.0, %v669
  %v671 = vpop.f32.mrb[0].mxu0
  %672 = vdwg.mxu0
  %v673 = vadd.f32 %v497, %v655
  %v674 = vadd.f32 %v502, %v660
  %v675 = vadd.f32 %v507, %v665
  %v676 = vadd.f32 %v512, %v670
  %v677 = vlaneseq
  %v678 = vshrl.u32 %v677, 7
  %v679 = vsub.s32 7, %v678
  %v680 = vrot.slane %v196, %v679
  %v681 = vmul.f32 %v164, %v680
  %v682 = vmul.f32 %v166, %v680
  %v683 = vmul.f32 %v168, %v680
  %v684 = vmul.f32 %v170, %v680
  %v685 = vlaneseq
  %v686 = vshrl.u32 %v685, 7
  %v687 = vsub.s32 0, %v686
  %v688 = vrot.slane %v197, %v687
  %v689 = vmul.f32 %v172, %v688
  %v690 = vmul.f32 %v174, %v688
  %v691 = vmul.f32 %v176, %v688
  %v692 = vmul.f32 %v178, %v688
  %v693 = vadd.f32 %v681, %v689
  %v694 = vadd.f32 %v682, %v690
  %v695 = vadd.f32 %v683, %v691
  %v696 = vadd.f32 %v684, %v692
  %v697 = vlaneseq
  %v698 = vshrl.u32 %v697, 7
  %v699 = vsub.s32 1, %v698
  %v700 = vrot.slane %v197, %v699
  %v701 = vmul.f32 %v152, %v700
  %v702 = vmul.f32 %v154, %v700
  %v703 = vmul.f32 %v156, %v700
  %v704 = vmul.f32 %v158, %v700
  %v705 = vadd.f32 %v693, %v701
  %v706 = vadd.f32 %v694, %v702
  %v707 = vadd.f32 %v695, %v703
  %v708 = vadd.f32 %v696, %v704
  %v709 = vlaneseq
  %v710 = vshrl.u32 %v709, 7
  %v711 = vsub.s32 2, %v710
  %v712 = vrot.slane %v197, %v711
  %v713 = vmul.f32 %v180, %v712
  %v714 = vmul.f32 %v182, %v712
  %v715 = vmul.f32 %v184, %v712
  %v716 = vmul.f32 %v186, %v712
  %v717 = vadd.f32 %v705, %v713
  %v718 = vadd.f32 %v706, %v714
  %v719 = vadd.f32 %v707, %v715
  %v720 = vadd.f32 %v708, %v716
  %v721 = vlaneseq
  %v722 = vshrl.u32 %v721, 7
  %v723 = vsub.s32 3, %v722
  %v724 = vrot.slane %v197, %v723
  %v725 = vmul.f32 %v188, %v724
  %v726 = vmul.f32 %v190, %v724
  %v727 = vmul.f32 %v192, %v724
  %v728 = vmul.f32 %v194, %v724
  %v729 = vadd.f32 %v717, %v725
  %v730 = vadd.f32 %v718, %v726
  %v731 = vadd.f32 %v719, %v727
  %v732 = vadd.f32 %v720, %v728
  %s733 = scalar_lea.vmem %s4, 96
  %v734 = vld [vmem:[%s733] sm:$0xff]
  %v735 = vld [vmem:[%s733 + $0x8] sm:$0xff]
  %v736 = vld [vmem:[%s733 + $0x10] sm:$0xff]
  %v737 = vld [vmem:[%s733 + $0x18] sm:$0xff]
  %v739 = vsel %vm320, %v734, 0
  %v742 = vsel %vm320, %v735, 0
  %v745 = vsel %vm320, %v736, 0
  %v748 = vsel %vm320, %v737, 0
  %750 = vmatprep.subr.mxu0 0.0
  %751 = vmatpush1.msra.mxu0 %v729
  %752 = vmatprep.subr.mxu0 0.0
  %753 = vmatpush1.msra.mxu0 %v730
  %754 = vmatprep.subr.mxu0 0.0
  %755 = vmatpush1.msra.mxu0 %v731
  %756 = vmatprep.subr.mxu0 0.0
  %757 = vmatpush1.msra.mxu0 %v732
  %758 = vmatprep.subr.mxu0 0.0
  %759 = vmatpush1.msra.mxu0 0.0
  %760 = vmatprep.subr.mxu0 0.0
  %761 = vmatpush1.msra.mxu0 0.0
  %762 = vmatprep.subr.mxu0 0.0
  %763 = vmatpush1.msra.mxu0 0.0
  %764 = vmatprep.subr.mxu0 0.0
  %765 = vmatpush1.msra.mxu0 0.0
  %766 = vmatprep.subr.mxu0 0.0
  %767 = vmatpush1.msra.mxu0 0.0
  %768 = vmatprep.subr.mxu0 0.0
  %769 = vmatpush1.msra.mxu0 0.0
  %770 = vmatprep.subr.mxu0 0.0
  %771 = vmatpush1.msra.mxu0 0.0
  %772 = vmatprep.subr.mxu0 0.0
  %773 = vmatpush1.msra.mxu0 0.0
  %774 = vmatprep.subr.mxu0 0.0
  %775 = vmatpush1.msra.mxu0 0.0
  %776 = vmatprep.subr.mxu0 0.0
  %777 = vmatpush1.msra.mxu0 0.0
  %778 = vmatprep.subr.mxu0 0.0
  %779 = vmatpush1.msra.mxu0 0.0
  %780 = vmatprep.subr.mxu0 0.0
  %781 = vmatpush1.msra.mxu0 0.0
  %782 = vmatprep.subr.mxu0 0.0
  %783 = vmatpush1.msra.mxu0 0.0
  %784 = vmatprep.subr.mxu0 0.0
  %785 = vmatpush1.msra.mxu0 0.0
  %786 = vmatprep.subr.mxu0 0.0
  %787 = vmatpush1.msra.mxu0 0.0
  %788 = vmatprep.subr.mxu0 0.0
  %789 = vmatpush1.msra.mxu0 0.0
  %790 = vmatprep.subr.mxu0 0.0
  %791 = vmatpush1.msra.mxu0 0.0
  %792 = vmatprep.subr.mxu0 0.0
  %793 = vmatpush1.msra.mxu0 0.0
  %794 = vmatprep.subr.mxu0 0.0
  %795 = vmatpush1.msra.mxu0 0.0
  %796 = vmatprep.subr.mxu0 0.0
  %797 = vmatpush1.msra.mxu0 0.0
  %798 = vmatprep.subr.mxu0 0.0
  %799 = vmatpush1.msra.mxu0 0.0
  %800 = vmatprep.subr.mxu0 0.0
  %801 = vmatpush1.msra.mxu0 0.0
  %802 = vmatprep.subr.mxu0 0.0
  %803 = vmatpush1.msra.mxu0 0.0
  %804 = vmatprep.subr.mxu0 0.0
  %805 = vmatpush1.msra.mxu0 0.0
  %806 = vmatprep.subr.mxu0 0.0
  %807 = vmatpush1.msra.mxu0 0.0
  %808 = vmatprep.subr.mxu0 0.0
  %809 = vmatpush1.msra.mxu0 0.0
  %810 = vmatprep.subr.mxu0 0.0
  %811 = vmatpush1.msra.mxu0 0.0
  %812 = vmatprep.subr.mxu0 0.0
  %813 = vmatpush1.msra.mxu0 0.0
  %814 = vmatprep.mubr.f32.mxu0 0.0
  %815 = vmatmul.mubr.f32.gmra.mrb[0].mxu0 %v739
  %v816 = vpop.f32.mrb[0].mxu0
  %v817 = vadd.f32 0.0, %v816
  %v818 = vpop.f32.mrb[0].mxu0
  %819 = vmatprep.mubr.f32.mxu0 0.0
  %820 = vmatmul.mubr.f32.gmra.mrb[0].mxu0 %v742
  %v821 = vpop.f32.mrb[0].mxu0
  %v822 = vadd.f32 0.0, %v821
  %v823 = vpop.f32.mrb[0].mxu0
  %824 = vmatprep.mubr.f32.mxu0 0.0
  %825 = vmatmul.mubr.f32.gmra.mrb[0].mxu0 %v745
  %v826 = vpop.f32.mrb[0].mxu0
  %v827 = vadd.f32 0.0, %v826
  %v828 = vpop.f32.mrb[0].mxu0
  %829 = vmatprep.mubr.f32.mxu0 0.0
  %830 = vmatmul.mubr.f32.gmra.mrb[0].mxu0 %v748
  %v831 = vpop.f32.mrb[0].mxu0
  %v832 = vadd.f32 0.0, %v831
  %v833 = vpop.f32.mrb[0].mxu0
  %834 = vdwg.mxu0
  %v835 = vadd.f32 %v673, %v817
  %v836 = vadd.f32 %v674, %v822
  %v837 = vadd.f32 %v675, %v827
  %v838 = vadd.f32 %v676, %v832
  %v839 = vlaneseq
  %v840 = vshrl.u32 %v839, 7
  %v841 = vsub.s32 4, %v840
  %v842 = vrot.slane %v197, %v841
  %v843 = vmul.f32 %v164, %v842
  %v844 = vmul.f32 %v166, %v842
  %v845 = vmul.f32 %v168, %v842
  %v846 = vmul.f32 %v170, %v842
  %v847 = vlaneseq
  %v848 = vshrl.u32 %v847, 7
  %v849 = vsub.s32 5, %v848
  %v850 = vrot.slane %v197, %v849
  %v851 = vmul.f32 %v172, %v850
  %v852 = vmul.f32 %v174, %v850
  %v853 = vmul.f32 %v176, %v850
  %v854 = vmul.f32 %v178, %v850
  %v855 = vadd.f32 %v843, %v851
  %v856 = vadd.f32 %v844, %v852
  %v857 = vadd.f32 %v845, %v853
  %v858 = vadd.f32 %v846, %v854
  %v859 = vlaneseq
  %v860 = vshrl.u32 %v859, 7
  %v861 = vsub.s32 6, %v860
  %v862 = vrot.slane %v197, %v861
  %v863 = vmul.f32 %v152, %v862
  %v864 = vmul.f32 %v154, %v862
  %v865 = vmul.f32 %v156, %v862
  %v866 = vmul.f32 %v158, %v862
  %v867 = vadd.f32 %v855, %v863
  %v868 = vadd.f32 %v856, %v864
  %v869 = vadd.f32 %v857, %v865
  %v870 = vadd.f32 %v858, %v866
  %v871 = vlaneseq
  %v872 = vshrl.u32 %v871, 7
  %v873 = vsub.s32 7, %v872
  %v874 = vrot.slane %v197, %v873
  %v875 = vmul.f32 %v180, %v874
  %v876 = vmul.f32 %v182, %v874
  %v877 = vmul.f32 %v184, %v874
  %v878 = vmul.f32 %v186, %v874
  %v879 = vadd.f32 %v867, %v875
  %v880 = vadd.f32 %v868, %v876
  %v881 = vadd.f32 %v869, %v877
  %v882 = vadd.f32 %v870, %v878
  %v883 = vlaneseq
  %v884 = vshrl.u32 %v883, 7
  %v885 = vsub.s32 0, %v884
  %v886 = vrot.slane %v198, %v885
  %v887 = vmul.f32 %v188, %v886
  %v888 = vmul.f32 %v190, %v886
  %v889 = vmul.f32 %v192, %v886
  %v890 = vmul.f32 %v194, %v886
  %v891 = vadd.f32 %v879, %v887
  %v892 = vadd.f32 %v880, %v888
  %v893 = vadd.f32 %v881, %v889
  %v894 = vadd.f32 %v882, %v890
  %s895 = scalar_lea.vmem %s4, 128
  %v896 = vld [vmem:[%s895] sm:$0xff]
  %v897 = vld [vmem:[%s895 + $0x8] sm:$0xff]
  %v898 = vld [vmem:[%s895 + $0x10] sm:$0xff]
  %v899 = vld [vmem:[%s895 + $0x18] sm:$0xff]
  %v901 = vsel %vm320, %v896, 0
  %v904 = vsel %vm320, %v897, 0
  %v907 = vsel %vm320, %v898, 0
  %v910 = vsel %vm320, %v899, 0
  %912 = vmatprep.subr.mxu0 0.0
  %913 = vmatpush1.msra.mxu0 %v891
  %914 = vmatprep.subr.mxu0 0.0
  %915 = vmatpush1.msra.mxu0 %v892
  %916 = vmatprep.subr.mxu0 0.0
  %917 = vmatpush1.msra.mxu0 %v893
  %918 = vmatprep.subr.mxu0 0.0
  %919 = vmatpush1.msra.mxu0 %v894
  %920 = vmatprep.subr.mxu0 0.0
  %921 = vmatpush1.msra.mxu0 0.0
  %922 = vmatprep.subr.mxu0 0.0
  %923 = vmatpush1.msra.mxu0 0.0
  %924 = vmatprep.subr.mxu0 0.0
  %925 = vmatpush1.msra.mxu0 0.0
  %926 = vmatprep.subr.mxu0 0.0
  %927 = vmatpush1.msra.mxu0 0.0
  %928 = vmatprep.subr.mxu0 0.0
  %929 = vmatpush1.msra.mxu0 0.0
  %930 = vmatprep.subr.mxu0 0.0
  %931 = vmatpush1.msra.mxu0 0.0
  %932 = vmatprep.subr.mxu0 0.0
  %933 = vmatpush1.msra.mxu0 0.0
  %934 = vmatprep.subr.mxu0 0.0
  %935 = vmatpush1.msra.mxu0 0.0
  %936 = vmatprep.subr.mxu0 0.0
  %937 = vmatpush1.msra.mxu0 0.0
  %938 = vmatprep.subr.mxu0 0.0
  %939 = vmatpush1.msra.mxu0 0.0
  %940 = vmatprep.subr.mxu0 0.0
  %941 = vmatpush1.msra.mxu0 0.0
  %942 = vmatprep.subr.mxu0 0.0
  %943 = vmatpush1.msra.mxu0 0.0
  %944 = vmatprep.subr.mxu0 0.0
  %945 = vmatpush1.msra.mxu0 0.0
  %946 = vmatprep.subr.mxu0 0.0
  %947 = vmatpush1.msra.mxu0 0.0
  %948 = vmatprep.subr.mxu0 0.0
  %949 = vmatpush1.msra.mxu0 0.0
  %950 = vmatprep.subr.mxu0 0.0
  %951 = vmatpush1.msra.mxu0 0.0
  %952 = vmatprep.subr.mxu0 0.0
  %953 = vmatpush1.msra.mxu0 0.0
  %954 = vmatprep.subr.mxu0 0.0
  %955 = vmatpush1.msra.mxu0 0.0
  %956 = vmatprep.subr.mxu0 0.0
  %957 = vmatpush1.msra.mxu0 0.0
  %958 = vmatprep.subr.mxu0 0.0
  %959 = vmatpush1.msra.mxu0 0.0
  %960 = vmatprep.subr.mxu0 0.0
  %961 = vmatpush1.msra.mxu0 0.0
  %962 = vmatprep.subr.mxu0 0.0
  %963 = vmatpush1.msra.mxu0 0.0
  %964 = vmatprep.subr.mxu0 0.0
  %965 = vmatpush1.msra.mxu0 0.0
  %966 = vmatprep.subr.mxu0 0.0
  %967 = vmatpush1.msra.mxu0 0.0
  %968 = vmatprep.subr.mxu0 0.0
  %969 = vmatpush1.msra.mxu0 0.0
  %970 = vmatprep.subr.mxu0 0.0
  %971 = vmatpush1.msra.mxu0 0.0
  %972 = vmatprep.subr.mxu0 0.0
  %973 = vmatpush1.msra.mxu0 0.0
  %974 = vmatprep.subr.mxu0 0.0
  %975 = vmatpush1.msra.mxu0 0.0
  %976 = vmatprep.mubr.f32.mxu0 0.0
  %977 = vmatmul.mubr.f32.gmra.mrb[0].mxu0 %v901
  %v978 = vpop.f32.mrb[0].mxu0
  %v979 = vadd.f32 0.0, %v978
  %v980 = vpop.f32.mrb[0].mxu0
  %981 = vmatprep.mubr.f32.mxu0 0.0
  %982 = vmatmul.mubr.f32.gmra.mrb[0].mxu0 %v904
  %v983 = vpop.f32.mrb[0].mxu0
  %v984 = vadd.f32 0.0, %v983
  %v985 = vpop.f32.mrb[0].mxu0
  %986 = vmatprep.mubr.f32.mxu0 0.0
  %987 = vmatmul.mubr.f32.gmra.mrb[0].mxu0 %v907
  %v988 = vpop.f32.mrb[0].mxu0
  %v989 = vadd.f32 0.0, %v988
  %v990 = vpop.f32.mrb[0].mxu0
  %991 = vmatprep.mubr.f32.mxu0 0.0
  %992 = vmatmul.mubr.f32.gmra.mrb[0].mxu0 %v910
  %v993 = vpop.f32.mrb[0].mxu0
  %v994 = vadd.f32 0.0, %v993
  %v995 = vpop.f32.mrb[0].mxu0
  %996 = vdwg.mxu0
  %v997 = vadd.f32 %v835, %v979
  %v998 = vadd.f32 %v836, %v984
  %v999 = vadd.f32 %v837, %v989
  %v1000 = vadd.f32 %v838, %v994
  %v1001 = vld [vmem:[%s2 + $0x1] sm:$0x1]
  %v1002 = vlaneseq
  %v1003 = vshrl.u32 %v1002, 7
  %v1004 = vsub.s32 0, %v1003
  %v1005 = vrot.slane %v1001, %v1004
  %v1006 = vadd.f32 %v997, %v1005
  %v1007 = vadd.f32 %v998, %v1005
  %v1008 = vadd.f32 %v999, %v1005
  %v1009 = vadd.f32 %v1000, %v1005
  %v1010 = vsub.f32 0.0, %v1006
  %v1011 = vsub.f32 0.0, %v1007
  %v1012 = vsub.f32 0.0, %v1008
  %v1013 = vsub.f32 0.0, %v1009
  %v1014 = vmul.f32 %v1010, 1.442695
  %v1015 = vpow.pop %v1014
  %v1016 = vmul.f32 %v1011, 1.442695
  %v1017 = vpow.pop %v1016
  %v1018 = vmul.f32 %v1012, 1.442695
  %v1019 = vpow.pop %v1018
  %v1020 = vmul.f32 %v1013, 1.442695
  %v1021 = vpow.pop %v1020
  %v1022 = vadd.f32 %v1015, 1.0
  %v1023 = vadd.f32 %v1017, 1.0
  %v1024 = vadd.f32 %v1019, 1.0
  %v1025 = vadd.f32 %v1021, 1.0
  %v1026 = vrcp.pop %v1022
  %v1027 = vmul.f32 %v1006, %v1026
  %v1028 = vrcp.pop %v1023
  %v1029 = vmul.f32 %v1007, %v1028
  %v1030 = vrcp.pop %v1024
  %v1031 = vmul.f32 %v1008, %v1030
  %v1032 = vrcp.pop %v1025
  %v1033 = vmul.f32 %v1009, %v1032
  %s1034 = scalar_lea.vmem %s5, 32
  %1035 = vst [vmem:[%s1034] sm:$0xff] %v1027
  %1036 = vst [vmem:[%s1034 + $0x8] sm:$0xff] %v1029
  %1037 = vst [vmem:[%s1034 + $0x10] sm:$0xff] %v1031
  %1038 = vst [vmem:[%s1034 + $0x18] sm:$0xff] %v1033
  // Predicated region
  $region22: #{ghostconv_forward.1} parent=0 // pred_check
    _
  $region23: #{ghostconv_forward.1} parent=0 // pred_check_branch
    %1040 = sbr.rel (0) target = $region25
  $region24: #{ghostconv_forward.1} parent=0 // pred_region
    _
  $region25: #{ghostconv_forward.1} parent=0 // pred_fallthru
    _
  // Predicated region
  $region26: #{ghostconv_forward.1} parent=0 // pred_check
    _
  $region27: #{ghostconv_forward.1} parent=0 // pred_check_branch
    %1042 = sbr.rel (0) target = $region29
  $region28: #{ghostconv_forward.1} parent=0 // pred_region
    _
  $region29: #{ghostconv_forward.1} parent=0 // pred_fallthru
    _

</llo_original>
